<compile_context>
chip_gen: v7x
topology: tpu7x:2x2x1
jax: 0.10.0
libtpu: 0.0.40
codegen_flags: <defaults>
</compile_context>

<pallas_src>
import math
import functools

import jax
import jax.numpy as jnp
from jax.experimental import pallas as pl
from jax.experimental.pallas import tpu as pltpu


# ------------------------------- fused kernel -------------------------------

def _mha_fused_kernel(*refs, num_heads, d_k, use_rpe, use_mask, mxu_dtype,
                      approx_recip):
    refs = list(refs)
    o_ref = refs.pop()                                   # output block (1, S, D)
    q_ref, k_ref, v_ref, w_ref, b_ref = refs[:5]
    pos = 5
    if use_rpe:
        rel_ref, w1_ref, b1_ref, w2_ref, b2_ref = refs[pos:pos + 5]
        pos += 5
    if use_mask:
        mask_ref = refs[pos]
        pos += 1

    scale = 1.0 / math.sqrt(d_k)

    def proj(x_ref, idx):
        # x: (S, D) @ w[idx]: (D, D) pre-transposed (Din, Dout); f32 accumulate.
        # Inputs and weights already arrive in mxu_dtype (pre-cast in wrapper).
        return (jnp.dot(x_ref[0], w_ref[idx],
                        preferred_element_type=jnp.float32) + b_ref[idx])

    qp = (proj(q_ref, 0) * scale).astype(mxu_dtype)      # (S, D); 1/sqrt(dk) folded into q
    kp = proj(k_ref, 1).astype(mxu_dtype)                # (S, D)
    vp = proj(v_ref, 2).astype(mxu_dtype)                # (S, D)

    if use_rpe:
        rel = rel_ref[0]                                 # (S, S) f32
        # Hidden channels of the 1x1-conv MLP (shared across heads), VPU elementwise.
        hidden = [jnp.maximum(rel * w1_ref[c] + b1_ref[c], 0.0)
                  for c in range(2 * num_heads)]

    if use_mask:
        keep = mask_ref[0] != 0                          # (S, S) bool, computed once

    head_outs = []
    for h in range(num_heads):                           # static unroll over heads
        lo = h * d_k
        qh = qp[:, lo:lo + d_k]                          # (S, dk) lane slice
        kh = kp[:, lo:lo + d_k]
        vh = vp[:, lo:lo + d_k]

        # (q/sqrt(dk)) @ k^T: contract dk of both operands -> no materialized .T
        s_h = jax.lax.dot_general(qh, kh, (((1,), (1,)), ((), ())),
                                  preferred_element_type=jnp.float32)   # (S, S)

        if use_rpe:
            # Second 1x1 conv for head h (w2/b2 pre-scaled by 1/sqrt(dk) on host).
            rpe_h = hidden[0] * w2_ref[h, 0]
            for c in range(1, 2 * num_heads):
                rpe_h = rpe_h + hidden[c] * w2_ref[h, c]
            s_h = s_h + rpe_h + b2_ref[h]

        if use_mask:
            s_h = jnp.where(keep, s_h, jnp.float32(-1e9))

        # Softmax in f32: reciprocal + multiply instead of S^2 divides.
        m_h = jnp.max(s_h, axis=-1, keepdims=True)
        e_h = jnp.exp(s_h - m_h)
        inv = pl.reciprocal(jnp.sum(e_h, axis=-1, keepdims=True),
                            approx=approx_recip)
        p_h = (e_h * inv).astype(mxu_dtype)

        head_outs.append(jnp.dot(p_h, vh, preferred_element_type=jnp.float32))  # (S, dk)

    # One wide (S,D)@(D,D) output matmul (better MXU utilization than per-head).
    attn = jnp.concatenate(head_outs, axis=-1).astype(mxu_dtype)          # (S, D)
    out = jnp.dot(attn, w_ref[3], preferred_element_type=jnp.float32) + b_ref[3]
    o_ref[0] = out.astype(o_ref.dtype)


# ------------------------------- forward pass --------------------------------

def mha_forward(params, Q, K, V, rel_pos=None, mask=None, *,
                num_heads, mxu_dtype=jnp.bfloat16):
    B, S, D = Q.shape
    assert D % num_heads == 0
    d_k = D // num_heads
    scale = 1.0 / math.sqrt(d_k)
    out_dtype = Q.dtype

    # Pre-transpose the four Linear weights once (Din, Dout), stack and pre-cast
    # to the MXU dtype (halves weight DMA on the bf16 path; no in-kernel cast).
    w_stack = jnp.stack([params["wq_w"].T, params["wk_w"].T,
                         params["wv_w"].T, params["wo_w"].T]).astype(mxu_dtype)  # (4,D,D)
    b_stack = jnp.stack([params["wq_b"], params["wk_b"],
                         params["wv_b"], params["wo_b"]]
                        ).reshape(4, 1, D).astype(jnp.float32)

    # Pre-cast activations (the MXU consumes them in mxu_dtype anyway).
    Qc, Kc, Vc = (x.astype(mxu_dtype) for x in (Q, K, V))

    use_rpe = rel_pos is not None
    use_mask = mask is not None

    bsd_spec = pl.BlockSpec((1, S, D), lambda b: (b, 0, 0))
    smem_spec = pl.BlockSpec(memory_space=pltpu.MemorySpace.SMEM)

    inputs = [Qc, Kc, Vc, w_stack, b_stack]
    in_specs = [bsd_spec, bsd_spec, bsd_spec,
                pl.BlockSpec((4, D, D), lambda b: (0, 0, 0)),
                pl.BlockSpec((4, 1, D), lambda b: (0, 0, 0))]

    if use_rpe:
        # Fold 1/sqrt(d_k) into the second 1x1 conv so the kernel never scales scores.
        w2s = (params["c2_w"] * scale).astype(jnp.float32)               # (H, 2H)
        b2s = (params["c2_b"] * scale).astype(jnp.float32)               # (H,)
        inputs += [rel_pos.astype(jnp.float32), params["c1_w"].astype(jnp.float32),
                   params["c1_b"].astype(jnp.float32), w2s, b2s]
        in_specs += [pl.BlockSpec((1, S, S), lambda b: (b, 0, 0)),
                     smem_spec, smem_spec, smem_spec, smem_spec]

    if use_mask:
        m = jnp.asarray(mask)
        if m.ndim == 4:                     # (B,1,S,S)/(B,H,S,S): heads must agree
            m = m[:, 0]
        m = jnp.broadcast_to(m != 0, (B, S, S)).astype(jnp.int8)         # 1 byte/elem
        inputs.append(m)
        in_specs.append(pl.BlockSpec((1, S, S), lambda b: (b, 0, 0)))

    kernel = functools.partial(
        _mha_fused_kernel, num_heads=num_heads, d_k=d_k,
        use_rpe=use_rpe, use_mask=use_mask, mxu_dtype=mxu_dtype,
        approx_recip=(mxu_dtype != jnp.float32))

    return pl.pallas_call(
        kernel,
        out_shape=jax.ShapeDtypeStruct((B, S, D), out_dtype),
        grid=(B,),
        in_specs=in_specs,
        out_specs=pl.BlockSpec((1, S, D), lambda b: (b, 0, 0)),
        compiler_params=pltpu.CompilerParams(
            dimension_semantics=("parallel",),
            vmem_limit_bytes=32 * 1024 * 1024),
    )(*inputs)


# ----------------------------- pure-JAX reference ----------------------------

def mha_reference(params, Q, K, V, rel_pos=None, mask=None, *, num_heads):
    B, S, D = Q.shape
    dk = D // num_heads
    lin = lambda x, w, b: x @ w.T + b
    sh = lambda x: x.reshape(B, S, num_heads, dk).transpose(0, 2, 1, 3)
    q = sh(lin(Q, params["wq_w"], params["wq_b"]))
    k = sh(lin(K, params["wk_w"], params["wk_b"]))
    v = sh(lin(V, params["wv_w"], params["wv_b"]))
    if rel_pos is not None:
        x = rel_pos[:, None, :, :]                                       # (B,1,S,S)
        h = jax.nn.relu(x * params["c1_w"][None, :, None, None]
                        + params["c1_b"][None, :, None, None])           # (B,2H,S,S)
        rpe = (jnp.einsum("bcij,oc->boij", h, params["c2_w"])
               + params["c2_b"][None, :, None, None])                    # (B,H,S,S)
    else:
        rpe = 0.0
    scores = (q @ k.transpose(0, 1, 3, 2) + rpe) / math.sqrt(dk)
    if mask is not None:
        m = jnp.asarray(mask)
        if m.ndim == 3:
            m = m[:, None]
        scores = jnp.where(m == 0, -1e9, scores)
    probs = jax.nn.softmax(scores, axis=-1)
    out = (probs @ v).transpose(0, 2, 1, 3).reshape(B, S, D)
    return lin(out, params["wo_w"], params["wo_b"])


# ----------------------------------- main ------------------------------------

if __name__ == "__main__":
    B, S, D, H = 2, 8, 32, 4          # batch, seq, d_model, num_heads
    key = jax.random.PRNGKey(0)
    keys = jax.random.split(key, 17)

    def rnd(k, shape, scale=0.1):
        return (scale * jax.random.normal(k, shape)).astype(jnp.float32)

    params = {
        "wq_w": rnd(keys[0], (D, D)), "wq_b": rnd(keys[1], (D,)),
        "wk_w": rnd(keys[2], (D, D)), "wk_b": rnd(keys[3], (D,)),
        "wv_w": rnd(keys[4], (D, D)), "wv_b": rnd(keys[5], (D,)),
        "wo_w": rnd(keys[6], (D, D)), "wo_b": rnd(keys[7], (D,)),
        # W_rpe: Conv2d(1, 2H, 1x1) then Conv2d(2H, H, 1x1); 1x1 kernels stored flat
        "c1_w": rnd(keys[8], (2 * H,)), "c1_b": rnd(keys[9], (2 * H,)),
        "c2_w": rnd(keys[10], (H, 2 * H)), "c2_b": rnd(keys[11], (H,)),
    }

    Q = rnd(keys[12], (B, S, D), scale=1.0)
    K = rnd(keys[13], (B, S, D), scale=1.0)
    V = rnd(keys[14], (B, S, D), scale=1.0)
    rel_pos = rnd(keys[15], (B, S, S), scale=1.0)
    mask = (jax.random.uniform(keys[16], (B, S, S)) > 0.3).astype(jnp.int32)
    mask = jnp.maximum(mask, jnp.eye(S, dtype=jnp.int32)[None])   # no all-zero rows

    # 1) exact f32-MXU path: tight check vs. pure-JAX reference
    out = jax.block_until_ready(
        mha_forward(params, Q, K, V, rel_pos=rel_pos, mask=None,
                    num_heads=H, mxu_dtype=jnp.float32))
    ref = mha_reference(params, Q, K, V, rel_pos, num_heads=H)
    assert out.shape == (B, S, D)
    assert jnp.allclose(out, ref, atol=2e-4, rtol=2e-4), "f32 mismatch vs reference"

    # 2) default bf16-MXU path (v6e/v7x fast path; f32 accumulate, f32 softmax)
    out_bf = jax.block_until_ready(
        mha_forward(params, Q, K, V, rel_pos=rel_pos, mask=None, num_heads=H))
    assert jnp.allclose(out_bf, ref, atol=2e-2, rtol=2e-2), "bf16 mismatch vs reference"

    # 3) masked path (int8 mask) with RPE
    out_m = jax.block_until_ready(
        mha_forward(params, Q, K, V, rel_pos=rel_pos, mask=mask, num_heads=H))
    ref_m = mha_reference(params, Q, K, V, rel_pos, mask, num_heads=H)
    assert jnp.allclose(out_m, ref_m, atol=2e-2, rtol=2e-2), "masked mismatch vs reference"

    # 4) rel_pos=None path (rpe == 0)
    out_n = jax.block_until_ready(
        mha_forward(params, Q, K, V, rel_pos=None, mask=None, num_heads=H))
    ref_n = mha_reference(params, Q, K, V, None, None, num_heads=H)
    assert jnp.allclose(out_n, ref_n, atol=2e-2, rtol=2e-2), "no-rpe mismatch vs reference"

    print("KERNEL_OK")
</pallas_src>

<mosaic_0001>
module attributes {stable_mosaic.version = 11 : i64} {
  func.func @_mha_fused_kernel(%arg0: i32, %arg1: memref<1x8x32xf32, #tpu.memory_space<vmem>>, %arg2: memref<1x8x32xf32, #tpu.memory_space<vmem>>, %arg3: memref<1x8x32xf32, #tpu.memory_space<vmem>>, %arg4: memref<4x32x32xf32, #tpu.memory_space<vmem>>, %arg5: memref<4x1x32xf32, #tpu.memory_space<vmem>>, %arg6: memref<1x8x8xf32, #tpu.memory_space<vmem>>, %arg7: memref<8xf32, #tpu.memory_space<smem>>, %arg8: memref<8xf32, #tpu.memory_space<smem>>, %arg9: memref<4x8xf32, #tpu.memory_space<smem>>, %arg10: memref<4xf32, #tpu.memory_space<smem>>, %arg11: memref<1x8x32xf32, #tpu.memory_space<vmem>>) attributes {dimension_semantics = [#tpu.dimension_semantics<parallel>], iteration_bounds = array<i64: 2>, scalar_prefetch = 0 : i64, scratch_operands = 0 : i64, tpu.core_type = #tpu.core_type<tc>, window_params = [{transform_indices = @transform_0, window_bounds = array<i64: 1, 8, 32>}, {transform_indices = @transform_1, window_bounds = array<i64: 1, 8, 32>}, {transform_indices = @transform_2, window_bounds = array<i64: 1, 8, 32>}, {pipeline_mode = #tpu.pipeline_mode<synchronous>, transform_indices = @transform_3, window_bounds = array<i64: 4, 32, 32>}, {pipeline_mode = #tpu.pipeline_mode<synchronous>, transform_indices = @transform_4, window_bounds = array<i64: 4, 1, 32>}, {transform_indices = @transform_5, window_bounds = array<i64: 1, 8, 8>}, {transform_indices = @transform_6, window_bounds = array<i64: 8>}, {transform_indices = @transform_7, window_bounds = array<i64: 8>}, {transform_indices = @transform_8, window_bounds = array<i64: 4, 8>}, {transform_indices = @transform_9, window_bounds = array<i64: 4>}, {transform_indices = @transform_10, window_bounds = array<i64: 1, 8, 32>}]} {
    %c0 = arith.constant 0 : index
    %c0_0 = arith.constant 0 : index
    %c0_1 = arith.constant 0 : index
    %0 = vector.load %arg1[%c0, %c0_0, %c0_1] : memref<1x8x32xf32, #tpu.memory_space<vmem>>, vector<1x8x32xf32>
    %1 = vector.shape_cast %0 : vector<1x8x32xf32> to vector<8x32xf32>
    %c0_2 = arith.constant 0 : index
    %c0_3 = arith.constant 0 : index
    %c0_4 = arith.constant 0 : index
    %2 = vector.load %arg4[%c0_2, %c0_3, %c0_4] : memref<4x32x32xf32, #tpu.memory_space<vmem>>, vector<1x32x32xf32>
    %3 = vector.shape_cast %2 : vector<1x32x32xf32> to vector<32x32xf32>
    %cst = arith.constant dense<0.000000e+00> : vector<8x32xf32>
    %4 = tpu.matmul %1, %3, %cst {dimension_numbers = #tpu.dot_dimension_numbers<[1], [0], [0], [1], [0, 0, 1, 1], [], []>} : vector<8x32xf32>, vector<32x32xf32>, vector<8x32xf32> -> vector<8x32xf32>
    %c0_5 = arith.constant 0 : index
    %c0_6 = arith.constant 0 : index
    %c0_7 = arith.constant 0 : index
    %5 = vector.load %arg5[%c0_5, %c0_6, %c0_7] : memref<4x1x32xf32, #tpu.memory_space<vmem>>, vector<1x1x32xf32>
    %6 = vector.shape_cast %5 : vector<1x1x32xf32> to vector<1x32xf32>
    %7 = vector.broadcast %6 : vector<1x32xf32> to vector<8x32xf32>
    %8 = arith.addf %4, %7 : vector<8x32xf32>
    %cst_8 = arith.constant 0.353553385 : f32
    %9 = vector.broadcast %cst_8 : f32 to vector<8x32xf32>
    %10 = arith.mulf %8, %9 : vector<8x32xf32>
    %c0_9 = arith.constant 0 : index
    %c0_10 = arith.constant 0 : index
    %c0_11 = arith.constant 0 : index
    %11 = vector.load %arg2[%c0_9, %c0_10, %c0_11] : memref<1x8x32xf32, #tpu.memory_space<vmem>>, vector<1x8x32xf32>
    %12 = vector.shape_cast %11 : vector<1x8x32xf32> to vector<8x32xf32>
    %c1 = arith.constant 1 : index
    %c0_12 = arith.constant 0 : index
    %c0_13 = arith.constant 0 : index
    %13 = vector.load %arg4[%c1, %c0_12, %c0_13] : memref<4x32x32xf32, #tpu.memory_space<vmem>>, vector<1x32x32xf32>
    %14 = vector.shape_cast %13 : vector<1x32x32xf32> to vector<32x32xf32>
    %cst_14 = arith.constant dense<0.000000e+00> : vector<8x32xf32>
    %15 = tpu.matmul %12, %14, %cst_14 {dimension_numbers = #tpu.dot_dimension_numbers<[1], [0], [0], [1], [0, 0, 1, 1], [], []>} : vector<8x32xf32>, vector<32x32xf32>, vector<8x32xf32> -> vector<8x32xf32>
    %c1_15 = arith.constant 1 : index
    %c0_16 = arith.constant 0 : index
    %c0_17 = arith.constant 0 : index
    %16 = vector.load %arg5[%c1_15, %c0_16, %c0_17] : memref<4x1x32xf32, #tpu.memory_space<vmem>>, vector<1x1x32xf32>
    %17 = vector.shape_cast %16 : vector<1x1x32xf32> to vector<1x32xf32>
    %18 = vector.broadcast %17 : vector<1x32xf32> to vector<8x32xf32>
    %19 = arith.addf %15, %18 : vector<8x32xf32>
    %c0_18 = arith.constant 0 : index
    %c0_19 = arith.constant 0 : index
    %c0_20 = arith.constant 0 : index
    %20 = vector.load %arg3[%c0_18, %c0_19, %c0_20] : memref<1x8x32xf32, #tpu.memory_space<vmem>>, vector<1x8x32xf32>
    %21 = vector.shape_cast %20 : vector<1x8x32xf32> to vector<8x32xf32>
    %c2 = arith.constant 2 : index
    %c0_21 = arith.constant 0 : index
    %c0_22 = arith.constant 0 : index
    %22 = vector.load %arg4[%c2, %c0_21, %c0_22] : memref<4x32x32xf32, #tpu.memory_space<vmem>>, vector<1x32x32xf32>
    %23 = vector.shape_cast %22 : vector<1x32x32xf32> to vector<32x32xf32>
    %cst_23 = arith.constant dense<0.000000e+00> : vector<8x32xf32>
    %24 = tpu.matmul %21, %23, %cst_23 {dimension_numbers = #tpu.dot_dimension_numbers<[1], [0], [0], [1], [0, 0, 1, 1], [], []>} : vector<8x32xf32>, vector<32x32xf32>, vector<8x32xf32> -> vector<8x32xf32>
    %c2_24 = arith.constant 2 : index
    %c0_25 = arith.constant 0 : index
    %c0_26 = arith.constant 0 : index
    %25 = vector.load %arg5[%c2_24, %c0_25, %c0_26] : memref<4x1x32xf32, #tpu.memory_space<vmem>>, vector<1x1x32xf32>
    %26 = vector.shape_cast %25 : vector<1x1x32xf32> to vector<1x32xf32>
    %27 = vector.broadcast %26 : vector<1x32xf32> to vector<8x32xf32>
    %28 = arith.addf %24, %27 : vector<8x32xf32>
    %c0_27 = arith.constant 0 : index
    %c0_28 = arith.constant 0 : index
    %c0_29 = arith.constant 0 : index
    %29 = vector.load %arg6[%c0_27, %c0_28, %c0_29] : memref<1x8x8xf32, #tpu.memory_space<vmem>>, vector<1x8x8xf32>
    %30 = vector.shape_cast %29 : vector<1x8x8xf32> to vector<8x8xf32>
    %c0_30 = arith.constant 0 : index
    %31 = memref.load %arg7[%c0_30] : memref<8xf32, #tpu.memory_space<smem>>
    %32 = vector.broadcast %31 : f32 to vector<8x8xf32>
    %33 = arith.mulf %30, %32 : vector<8x8xf32>
    %c0_31 = arith.constant 0 : index
    %34 = memref.load %arg8[%c0_31] : memref<8xf32, #tpu.memory_space<smem>>
    %35 = vector.broadcast %34 : f32 to vector<8x8xf32>
    %36 = arith.addf %33, %35 : vector<8x8xf32>
    %cst_32 = arith.constant 0.000000e+00 : f32
    %37 = vector.broadcast %cst_32 : f32 to vector<8x8xf32>
    %38 = arith.maximumf %36, %37 : vector<8x8xf32>
    %c1_33 = arith.constant 1 : index
    %39 = memref.load %arg7[%c1_33] : memref<8xf32, #tpu.memory_space<smem>>
    %40 = vector.broadcast %39 : f32 to vector<8x8xf32>
    %41 = arith.mulf %30, %40 : vector<8x8xf32>
    %c1_34 = arith.constant 1 : index
    %42 = memref.load %arg8[%c1_34] : memref<8xf32, #tpu.memory_space<smem>>
    %43 = vector.broadcast %42 : f32 to vector<8x8xf32>
    %44 = arith.addf %41, %43 : vector<8x8xf32>
    %cst_35 = arith.constant 0.000000e+00 : f32
    %45 = vector.broadcast %cst_35 : f32 to vector<8x8xf32>
    %46 = arith.maximumf %44, %45 : vector<8x8xf32>
    %c2_36 = arith.constant 2 : index
    %47 = memref.load %arg7[%c2_36] : memref<8xf32, #tpu.memory_space<smem>>
    %48 = vector.broadcast %47 : f32 to vector<8x8xf32>
    %49 = arith.mulf %30, %48 : vector<8x8xf32>
    %c2_37 = arith.constant 2 : index
    %50 = memref.load %arg8[%c2_37] : memref<8xf32, #tpu.memory_space<smem>>
    %51 = vector.broadcast %50 : f32 to vector<8x8xf32>
    %52 = arith.addf %49, %51 : vector<8x8xf32>
    %cst_38 = arith.constant 0.000000e+00 : f32
    %53 = vector.broadcast %cst_38 : f32 to vector<8x8xf32>
    %54 = arith.maximumf %52, %53 : vector<8x8xf32>
    %c3 = arith.constant 3 : index
    %55 = memref.load %arg7[%c3] : memref<8xf32, #tpu.memory_space<smem>>
    %56 = vector.broadcast %55 : f32 to vector<8x8xf32>
    %57 = arith.mulf %30, %56 : vector<8x8xf32>
    %c3_39 = arith.constant 3 : index
    %58 = memref.load %arg8[%c3_39] : memref<8xf32, #tpu.memory_space<smem>>
    %59 = vector.broadcast %58 : f32 to vector<8x8xf32>
    %60 = arith.addf %57, %59 : vector<8x8xf32>
    %cst_40 = arith.constant 0.000000e+00 : f32
    %61 = vector.broadcast %cst_40 : f32 to vector<8x8xf32>
    %62 = arith.maximumf %60, %61 : vector<8x8xf32>
    %c4 = arith.constant 4 : index
    %63 = memref.load %arg7[%c4] : memref<8xf32, #tpu.memory_space<smem>>
    %64 = vector.broadcast %63 : f32 to vector<8x8xf32>
    %65 = arith.mulf %30, %64 : vector<8x8xf32>
    %c4_41 = arith.constant 4 : index
    %66 = memref.load %arg8[%c4_41] : memref<8xf32, #tpu.memory_space<smem>>
    %67 = vector.broadcast %66 : f32 to vector<8x8xf32>
    %68 = arith.addf %65, %67 : vector<8x8xf32>
    %cst_42 = arith.constant 0.000000e+00 : f32
    %69 = vector.broadcast %cst_42 : f32 to vector<8x8xf32>
    %70 = arith.maximumf %68, %69 : vector<8x8xf32>
    %c5 = arith.constant 5 : index
    %71 = memref.load %arg7[%c5] : memref<8xf32, #tpu.memory_space<smem>>
    %72 = vector.broadcast %71 : f32 to vector<8x8xf32>
    %73 = arith.mulf %30, %72 : vector<8x8xf32>
    %c5_43 = arith.constant 5 : index
    %74 = memref.load %arg8[%c5_43] : memref<8xf32, #tpu.memory_space<smem>>
    %75 = vector.broadcast %74 : f32 to vector<8x8xf32>
    %76 = arith.addf %73, %75 : vector<8x8xf32>
    %cst_44 = arith.constant 0.000000e+00 : f32
    %77 = vector.broadcast %cst_44 : f32 to vector<8x8xf32>
    %78 = arith.maximumf %76, %77 : vector<8x8xf32>
    %c6 = arith.constant 6 : index
    %79 = memref.load %arg7[%c6] : memref<8xf32, #tpu.memory_space<smem>>
    %80 = vector.broadcast %79 : f32 to vector<8x8xf32>
    %81 = arith.mulf %30, %80 : vector<8x8xf32>
    %c6_45 = arith.constant 6 : index
    %82 = memref.load %arg8[%c6_45] : memref<8xf32, #tpu.memory_space<smem>>
    %83 = vector.broadcast %82 : f32 to vector<8x8xf32>
    %84 = arith.addf %81, %83 : vector<8x8xf32>
    %cst_46 = arith.constant 0.000000e+00 : f32
    %85 = vector.broadcast %cst_46 : f32 to vector<8x8xf32>
    %86 = arith.maximumf %84, %85 : vector<8x8xf32>
    %c7 = arith.constant 7 : index
    %87 = memref.load %arg7[%c7] : memref<8xf32, #tpu.memory_space<smem>>
    %88 = vector.broadcast %87 : f32 to vector<8x8xf32>
    %89 = arith.mulf %30, %88 : vector<8x8xf32>
    %c7_47 = arith.constant 7 : index
    %90 = memref.load %arg8[%c7_47] : memref<8xf32, #tpu.memory_space<smem>>
    %91 = vector.broadcast %90 : f32 to vector<8x8xf32>
    %92 = arith.addf %89, %91 : vector<8x8xf32>
    %cst_48 = arith.constant 0.000000e+00 : f32
    %93 = vector.broadcast %cst_48 : f32 to vector<8x8xf32>
    %94 = arith.maximumf %92, %93 : vector<8x8xf32>
    %95 = vector.extract_strided_slice %10 {offsets = [0, 0], sizes = [8, 8], strides = [1, 1]} : vector<8x32xf32> to vector<8x8xf32>
    %96 = vector.extract_strided_slice %19 {offsets = [0, 0], sizes = [8, 8], strides = [1, 1]} : vector<8x32xf32> to vector<8x8xf32>
    %97 = vector.extract_strided_slice %28 {offsets = [0, 0], sizes = [8, 8], strides = [1, 1]} : vector<8x32xf32> to vector<8x8xf32>
    %cst_49 = arith.constant dense<0.000000e+00> : vector<8x8xf32>
    %98 = tpu.matmul %95, %96, %cst_49 {dimension_numbers = #tpu.dot_dimension_numbers<[1], [1], [0], [0], [0, 0, 1, 0], [], []>} : vector<8x8xf32>, vector<8x8xf32>, vector<8x8xf32> -> vector<8x8xf32>
    %c0_50 = arith.constant 0 : index
    %c0_51 = arith.constant 0 : index
    %99 = memref.load %arg9[%c0_50, %c0_51] : memref<4x8xf32, #tpu.memory_space<smem>>
    %100 = vector.broadcast %99 : f32 to vector<8x8xf32>
    %101 = arith.mulf %38, %100 : vector<8x8xf32>
    %c0_52 = arith.constant 0 : index
    %c1_53 = arith.constant 1 : index
    %102 = memref.load %arg9[%c0_52, %c1_53] : memref<4x8xf32, #tpu.memory_space<smem>>
    %103 = vector.broadcast %102 : f32 to vector<8x8xf32>
    %104 = arith.mulf %46, %103 : vector<8x8xf32>
    %105 = arith.addf %101, %104 : vector<8x8xf32>
    %c0_54 = arith.constant 0 : index
    %c2_55 = arith.constant 2 : index
    %106 = memref.load %arg9[%c0_54, %c2_55] : memref<4x8xf32, #tpu.memory_space<smem>>
    %107 = vector.broadcast %106 : f32 to vector<8x8xf32>
    %108 = arith.mulf %54, %107 : vector<8x8xf32>
    %109 = arith.addf %105, %108 : vector<8x8xf32>
    %c0_56 = arith.constant 0 : index
    %c3_57 = arith.constant 3 : index
    %110 = memref.load %arg9[%c0_56, %c3_57] : memref<4x8xf32, #tpu.memory_space<smem>>
    %111 = vector.broadcast %110 : f32 to vector<8x8xf32>
    %112 = arith.mulf %62, %111 : vector<8x8xf32>
    %113 = arith.addf %109, %112 : vector<8x8xf32>
    %c0_58 = arith.constant 0 : index
    %c4_59 = arith.constant 4 : index
    %114 = memref.load %arg9[%c0_58, %c4_59] : memref<4x8xf32, #tpu.memory_space<smem>>
    %115 = vector.broadcast %114 : f32 to vector<8x8xf32>
    %116 = arith.mulf %70, %115 : vector<8x8xf32>
    %117 = arith.addf %113, %116 : vector<8x8xf32>
    %c0_60 = arith.constant 0 : index
    %c5_61 = arith.constant 5 : index
    %118 = memref.load %arg9[%c0_60, %c5_61] : memref<4x8xf32, #tpu.memory_space<smem>>
    %119 = vector.broadcast %118 : f32 to vector<8x8xf32>
    %120 = arith.mulf %78, %119 : vector<8x8xf32>
    %121 = arith.addf %117, %120 : vector<8x8xf32>
    %c0_62 = arith.constant 0 : index
    %c6_63 = arith.constant 6 : index
    %122 = memref.load %arg9[%c0_62, %c6_63] : memref<4x8xf32, #tpu.memory_space<smem>>
    %123 = vector.broadcast %122 : f32 to vector<8x8xf32>
    %124 = arith.mulf %86, %123 : vector<8x8xf32>
    %125 = arith.addf %121, %124 : vector<8x8xf32>
    %c0_64 = arith.constant 0 : index
    %c7_65 = arith.constant 7 : index
    %126 = memref.load %arg9[%c0_64, %c7_65] : memref<4x8xf32, #tpu.memory_space<smem>>
    %127 = vector.broadcast %126 : f32 to vector<8x8xf32>
    %128 = arith.mulf %94, %127 : vector<8x8xf32>
    %129 = arith.addf %125, %128 : vector<8x8xf32>
    %130 = arith.addf %98, %129 : vector<8x8xf32>
    %c0_66 = arith.constant 0 : index
    %131 = memref.load %arg10[%c0_66] : memref<4xf32, #tpu.memory_space<smem>>
    %132 = vector.broadcast %131 : f32 to vector<8x8xf32>
    %133 = arith.addf %130, %132 : vector<8x8xf32>
    %cst_67 = arith.constant dense<0xFF800000> : vector<8xf32>
    %134 = vector.multi_reduction <maximumf>, %133, %cst_67 [1] : vector<8x8xf32> to vector<8xf32>
    %135 = vector.shape_cast %134 : vector<8xf32> to vector<8x1xf32>
    %136 = vector.broadcast %135 : vector<8x1xf32> to vector<8x8xf32>
    %137 = arith.subf %133, %136 : vector<8x8xf32>
    %138 = math.exp %137 : vector<8x8xf32>
    %cst_68 = arith.constant dense<0.000000e+00> : vector<8xf32>
    %139 = vector.multi_reduction <add>, %138, %cst_68 [1] : vector<8x8xf32> to vector<8xf32>
    %140 = vector.shape_cast %139 : vector<8xf32> to vector<8x1xf32>
    %141 = tpu.reciprocal %140 : vector<8x1xf32> -> vector<8x1xf32>
    %142 = vector.broadcast %141 : vector<8x1xf32> to vector<8x8xf32>
    %143 = arith.mulf %138, %142 : vector<8x8xf32>
    %cst_69 = arith.constant dense<0.000000e+00> : vector<8x8xf32>
    %144 = tpu.matmul %143, %97, %cst_69 {dimension_numbers = #tpu.dot_dimension_numbers<[1], [0], [0], [1], [0, 0, 1, 1], [], []>} : vector<8x8xf32>, vector<8x8xf32>, vector<8x8xf32> -> vector<8x8xf32>
    %145 = vector.extract_strided_slice %10 {offsets = [0, 8], sizes = [8, 8], strides = [1, 1]} : vector<8x32xf32> to vector<8x8xf32>
    %146 = vector.extract_strided_slice %19 {offsets = [0, 8], sizes = [8, 8], strides = [1, 1]} : vector<8x32xf32> to vector<8x8xf32>
    %147 = vector.extract_strided_slice %28 {offsets = [0, 8], sizes = [8, 8], strides = [1, 1]} : vector<8x32xf32> to vector<8x8xf32>
    %cst_70 = arith.constant dense<0.000000e+00> : vector<8x8xf32>
    %148 = tpu.matmul %145, %146, %cst_70 {dimension_numbers = #tpu.dot_dimension_numbers<[1], [1], [0], [0], [0, 0, 1, 0], [], []>} : vector<8x8xf32>, vector<8x8xf32>, vector<8x8xf32> -> vector<8x8xf32>
    %c1_71 = arith.constant 1 : index
    %c0_72 = arith.constant 0 : index
    %149 = memref.load %arg9[%c1_71, %c0_72] : memref<4x8xf32, #tpu.memory_space<smem>>
    %150 = vector.broadcast %149 : f32 to vector<8x8xf32>
    %151 = arith.mulf %38, %150 : vector<8x8xf32>
    %c1_73 = arith.constant 1 : index
    %c1_74 = arith.constant 1 : index
    %152 = memref.load %arg9[%c1_73, %c1_74] : memref<4x8xf32, #tpu.memory_space<smem>>
    %153 = vector.broadcast %152 : f32 to vector<8x8xf32>
    %154 = arith.mulf %46, %153 : vector<8x8xf32>
    %155 = arith.addf %151, %154 : vector<8x8xf32>
    %c1_75 = arith.constant 1 : index
    %c2_76 = arith.constant 2 : index
    %156 = memref.load %arg9[%c1_75, %c2_76] : memref<4x8xf32, #tpu.memory_space<smem>>
    %157 = vector.broadcast %156 : f32 to vector<8x8xf32>
    %158 = arith.mulf %54, %157 : vector<8x8xf32>
    %159 = arith.addf %155, %158 : vector<8x8xf32>
    %c1_77 = arith.constant 1 : index
    %c3_78 = arith.constant 3 : index
    %160 = memref.load %arg9[%c1_77, %c3_78] : memref<4x8xf32, #tpu.memory_space<smem>>
    %161 = vector.broadcast %160 : f32 to vector<8x8xf32>
    %162 = arith.mulf %62, %161 : vector<8x8xf32>
    %163 = arith.addf %159, %162 : vector<8x8xf32>
    %c1_79 = arith.constant 1 : index
    %c4_80 = arith.constant 4 : index
    %164 = memref.load %arg9[%c1_79, %c4_80] : memref<4x8xf32, #tpu.memory_space<smem>>
    %165 = vector.broadcast %164 : f32 to vector<8x8xf32>
    %166 = arith.mulf %70, %165 : vector<8x8xf32>
    %167 = arith.addf %163, %166 : vector<8x8xf32>
    %c1_81 = arith.constant 1 : index
    %c5_82 = arith.constant 5 : index
    %168 = memref.load %arg9[%c1_81, %c5_82] : memref<4x8xf32, #tpu.memory_space<smem>>
    %169 = vector.broadcast %168 : f32 to vector<8x8xf32>
    %170 = arith.mulf %78, %169 : vector<8x8xf32>
    %171 = arith.addf %167, %170 : vector<8x8xf32>
    %c1_83 = arith.constant 1 : index
    %c6_84 = arith.constant 6 : index
    %172 = memref.load %arg9[%c1_83, %c6_84] : memref<4x8xf32, #tpu.memory_space<smem>>
    %173 = vector.broadcast %172 : f32 to vector<8x8xf32>
    %174 = arith.mulf %86, %173 : vector<8x8xf32>
    %175 = arith.addf %171, %174 : vector<8x8xf32>
    %c1_85 = arith.constant 1 : index
    %c7_86 = arith.constant 7 : index
    %176 = memref.load %arg9[%c1_85, %c7_86] : memref<4x8xf32, #tpu.memory_space<smem>>
    %177 = vector.broadcast %176 : f32 to vector<8x8xf32>
    %178 = arith.mulf %94, %177 : vector<8x8xf32>
    %179 = arith.addf %175, %178 : vector<8x8xf32>
    %180 = arith.addf %148, %179 : vector<8x8xf32>
    %c1_87 = arith.constant 1 : index
    %181 = memref.load %arg10[%c1_87] : memref<4xf32, #tpu.memory_space<smem>>
    %182 = vector.broadcast %181 : f32 to vector<8x8xf32>
    %183 = arith.addf %180, %182 : vector<8x8xf32>
    %cst_88 = arith.constant dense<0xFF800000> : vector<8xf32>
    %184 = vector.multi_reduction <maximumf>, %183, %cst_88 [1] : vector<8x8xf32> to vector<8xf32>
    %185 = vector.shape_cast %184 : vector<8xf32> to vector<8x1xf32>
    %186 = vector.broadcast %185 : vector<8x1xf32> to vector<8x8xf32>
    %187 = arith.subf %183, %186 : vector<8x8xf32>
    %188 = math.exp %187 : vector<8x8xf32>
    %cst_89 = arith.constant dense<0.000000e+00> : vector<8xf32>
    %189 = vector.multi_reduction <add>, %188, %cst_89 [1] : vector<8x8xf32> to vector<8xf32>
    %190 = vector.shape_cast %189 : vector<8xf32> to vector<8x1xf32>
    %191 = tpu.reciprocal %190 : vector<8x1xf32> -> vector<8x1xf32>
    %192 = vector.broadcast %191 : vector<8x1xf32> to vector<8x8xf32>
    %193 = arith.mulf %188, %192 : vector<8x8xf32>
    %cst_90 = arith.constant dense<0.000000e+00> : vector<8x8xf32>
    %194 = tpu.matmul %193, %147, %cst_90 {dimension_numbers = #tpu.dot_dimension_numbers<[1], [0], [0], [1], [0, 0, 1, 1], [], []>} : vector<8x8xf32>, vector<8x8xf32>, vector<8x8xf32> -> vector<8x8xf32>
    %195 = vector.extract_strided_slice %10 {offsets = [0, 16], sizes = [8, 8], strides = [1, 1]} : vector<8x32xf32> to vector<8x8xf32>
    %196 = vector.extract_strided_slice %19 {offsets = [0, 16], sizes = [8, 8], strides = [1, 1]} : vector<8x32xf32> to vector<8x8xf32>
    %197 = vector.extract_strided_slice %28 {offsets = [0, 16], sizes = [8, 8], strides = [1, 1]} : vector<8x32xf32> to vector<8x8xf32>
    %cst_91 = arith.constant dense<0.000000e+00> : vector<8x8xf32>
    %198 = tpu.matmul %195, %196, %cst_91 {dimension_numbers = #tpu.dot_dimension_numbers<[1], [1], [0], [0], [0, 0, 1, 0], [], []>} : vector<8x8xf32>, vector<8x8xf32>, vector<8x8xf32> -> vector<8x8xf32>
    %c2_92 = arith.constant 2 : index
    %c0_93 = arith.constant 0 : index
    %199 = memref.load %arg9[%c2_92, %c0_93] : memref<4x8xf32, #tpu.memory_space<smem>>
    %200 = vector.broadcast %199 : f32 to vector<8x8xf32>
    %201 = arith.mulf %38, %200 : vector<8x8xf32>
    %c2_94 = arith.constant 2 : index
    %c1_95 = arith.constant 1 : index
    %202 = memref.load %arg9[%c2_94, %c1_95] : memref<4x8xf32, #tpu.memory_space<smem>>
    %203 = vector.broadcast %202 : f32 to vector<8x8xf32>
    %204 = arith.mulf %46, %203 : vector<8x8xf32>
    %205 = arith.addf %201, %204 : vector<8x8xf32>
    %c2_96 = arith.constant 2 : index
    %c2_97 = arith.constant 2 : index
    %206 = memref.load %arg9[%c2_96, %c2_97] : memref<4x8xf32, #tpu.memory_space<smem>>
    %207 = vector.broadcast %206 : f32 to vector<8x8xf32>
    %208 = arith.mulf %54, %207 : vector<8x8xf32>
    %209 = arith.addf %205, %208 : vector<8x8xf32>
    %c2_98 = arith.constant 2 : index
    %c3_99 = arith.constant 3 : index
    %210 = memref.load %arg9[%c2_98, %c3_99] : memref<4x8xf32, #tpu.memory_space<smem>>
    %211 = vector.broadcast %210 : f32 to vector<8x8xf32>
    %212 = arith.mulf %62, %211 : vector<8x8xf32>
    %213 = arith.addf %209, %212 : vector<8x8xf32>
    %c2_100 = arith.constant 2 : index
    %c4_101 = arith.constant 4 : index
    %214 = memref.load %arg9[%c2_100, %c4_101] : memref<4x8xf32, #tpu.memory_space<smem>>
    %215 = vector.broadcast %214 : f32 to vector<8x8xf32>
    %216 = arith.mulf %70, %215 : vector<8x8xf32>
    %217 = arith.addf %213, %216 : vector<8x8xf32>
    %c2_102 = arith.constant 2 : index
    %c5_103 = arith.constant 5 : index
    %218 = memref.load %arg9[%c2_102, %c5_103] : memref<4x8xf32, #tpu.memory_space<smem>>
    %219 = vector.broadcast %218 : f32 to vector<8x8xf32>
    %220 = arith.mulf %78, %219 : vector<8x8xf32>
    %221 = arith.addf %217, %220 : vector<8x8xf32>
    %c2_104 = arith.constant 2 : index
    %c6_105 = arith.constant 6 : index
    %222 = memref.load %arg9[%c2_104, %c6_105] : memref<4x8xf32, #tpu.memory_space<smem>>
    %223 = vector.broadcast %222 : f32 to vector<8x8xf32>
    %224 = arith.mulf %86, %223 : vector<8x8xf32>
    %225 = arith.addf %221, %224 : vector<8x8xf32>
    %c2_106 = arith.constant 2 : index
    %c7_107 = arith.constant 7 : index
    %226 = memref.load %arg9[%c2_106, %c7_107] : memref<4x8xf32, #tpu.memory_space<smem>>
    %227 = vector.broadcast %226 : f32 to vector<8x8xf32>
    %228 = arith.mulf %94, %227 : vector<8x8xf32>
    %229 = arith.addf %225, %228 : vector<8x8xf32>
    %230 = arith.addf %198, %229 : vector<8x8xf32>
    %c2_108 = arith.constant 2 : index
    %231 = memref.load %arg10[%c2_108] : memref<4xf32, #tpu.memory_space<smem>>
    %232 = vector.broadcast %231 : f32 to vector<8x8xf32>
    %233 = arith.addf %230, %232 : vector<8x8xf32>
    %cst_109 = arith.constant dense<0xFF800000> : vector<8xf32>
    %234 = vector.multi_reduction <maximumf>, %233, %cst_109 [1] : vector<8x8xf32> to vector<8xf32>
    %235 = vector.shape_cast %234 : vector<8xf32> to vector<8x1xf32>
    %236 = vector.broadcast %235 : vector<8x1xf32> to vector<8x8xf32>
    %237 = arith.subf %233, %236 : vector<8x8xf32>
    %238 = math.exp %237 : vector<8x8xf32>
    %cst_110 = arith.constant dense<0.000000e+00> : vector<8xf32>
    %239 = vector.multi_reduction <add>, %238, %cst_110 [1] : vector<8x8xf32> to vector<8xf32>
    %240 = vector.shape_cast %239 : vector<8xf32> to vector<8x1xf32>
    %241 = tpu.reciprocal %240 : vector<8x1xf32> -> vector<8x1xf32>
    %242 = vector.broadcast %241 : vector<8x1xf32> to vector<8x8xf32>
    %243 = arith.mulf %238, %242 : vector<8x8xf32>
    %cst_111 = arith.constant dense<0.000000e+00> : vector<8x8xf32>
    %244 = tpu.matmul %243, %197, %cst_111 {dimension_numbers = #tpu.dot_dimension_numbers<[1], [0], [0], [1], [0, 0, 1, 1], [], []>} : vector<8x8xf32>, vector<8x8xf32>, vector<8x8xf32> -> vector<8x8xf32>
    %245 = vector.extract_strided_slice %10 {offsets = [0, 24], sizes = [8, 8], strides = [1, 1]} : vector<8x32xf32> to vector<8x8xf32>
    %246 = vector.extract_strided_slice %19 {offsets = [0, 24], sizes = [8, 8], strides = [1, 1]} : vector<8x32xf32> to vector<8x8xf32>
    %247 = vector.extract_strided_slice %28 {offsets = [0, 24], sizes = [8, 8], strides = [1, 1]} : vector<8x32xf32> to vector<8x8xf32>
    %cst_112 = arith.constant dense<0.000000e+00> : vector<8x8xf32>
    %248 = tpu.matmul %245, %246, %cst_112 {dimension_numbers = #tpu.dot_dimension_numbers<[1], [1], [0], [0], [0, 0, 1, 0], [], []>} : vector<8x8xf32>, vector<8x8xf32>, vector<8x8xf32> -> vector<8x8xf32>
    %c3_113 = arith.constant 3 : index
    %c0_114 = arith.constant 0 : index
    %249 = memref.load %arg9[%c3_113, %c0_114] : memref<4x8xf32, #tpu.memory_space<smem>>
    %250 = vector.broadcast %249 : f32 to vector<8x8xf32>
    %251 = arith.mulf %38, %250 : vector<8x8xf32>
    %c3_115 = arith.constant 3 : index
    %c1_116 = arith.constant 1 : index
    %252 = memref.load %arg9[%c3_115, %c1_116] : memref<4x8xf32, #tpu.memory_space<smem>>
    %253 = vector.broadcast %252 : f32 to vector<8x8xf32>
    %254 = arith.mulf %46, %253 : vector<8x8xf32>
    %255 = arith.addf %251, %254 : vector<8x8xf32>
    %c3_117 = arith.constant 3 : index
    %c2_118 = arith.constant 2 : index
    %256 = memref.load %arg9[%c3_117, %c2_118] : memref<4x8xf32, #tpu.memory_space<smem>>
    %257 = vector.broadcast %256 : f32 to vector<8x8xf32>
    %258 = arith.mulf %54, %257 : vector<8x8xf32>
    %259 = arith.addf %255, %258 : vector<8x8xf32>
    %c3_119 = arith.constant 3 : index
    %c3_120 = arith.constant 3 : index
    %260 = memref.load %arg9[%c3_119, %c3_120] : memref<4x8xf32, #tpu.memory_space<smem>>
    %261 = vector.broadcast %260 : f32 to vector<8x8xf32>
    %262 = arith.mulf %62, %261 : vector<8x8xf32>
    %263 = arith.addf %259, %262 : vector<8x8xf32>
    %c3_121 = arith.constant 3 : index
    %c4_122 = arith.constant 4 : index
    %264 = memref.load %arg9[%c3_121, %c4_122] : memref<4x8xf32, #tpu.memory_space<smem>>
    %265 = vector.broadcast %264 : f32 to vector<8x8xf32>
    %266 = arith.mulf %70, %265 : vector<8x8xf32>
    %267 = arith.addf %263, %266 : vector<8x8xf32>
    %c3_123 = arith.constant 3 : index
    %c5_124 = arith.constant 5 : index
    %268 = memref.load %arg9[%c3_123, %c5_124] : memref<4x8xf32, #tpu.memory_space<smem>>
    %269 = vector.broadcast %268 : f32 to vector<8x8xf32>
    %270 = arith.mulf %78, %269 : vector<8x8xf32>
    %271 = arith.addf %267, %270 : vector<8x8xf32>
    %c3_125 = arith.constant 3 : index
    %c6_126 = arith.constant 6 : index
    %272 = memref.load %arg9[%c3_125, %c6_126] : memref<4x8xf32, #tpu.memory_space<smem>>
    %273 = vector.broadcast %272 : f32 to vector<8x8xf32>
    %274 = arith.mulf %86, %273 : vector<8x8xf32>
    %275 = arith.addf %271, %274 : vector<8x8xf32>
    %c3_127 = arith.constant 3 : index
    %c7_128 = arith.constant 7 : index
    %276 = memref.load %arg9[%c3_127, %c7_128] : memref<4x8xf32, #tpu.memory_space<smem>>
    %277 = vector.broadcast %276 : f32 to vector<8x8xf32>
    %278 = arith.mulf %94, %277 : vector<8x8xf32>
    %279 = arith.addf %275, %278 : vector<8x8xf32>
    %280 = arith.addf %248, %279 : vector<8x8xf32>
    %c3_129 = arith.constant 3 : index
    %281 = memref.load %arg10[%c3_129] : memref<4xf32, #tpu.memory_space<smem>>
    %282 = vector.broadcast %281 : f32 to vector<8x8xf32>
    %283 = arith.addf %280, %282 : vector<8x8xf32>
    %cst_130 = arith.constant dense<0xFF800000> : vector<8xf32>
    %284 = vector.multi_reduction <maximumf>, %283, %cst_130 [1] : vector<8x8xf32> to vector<8xf32>
    %285 = vector.shape_cast %284 : vector<8xf32> to vector<8x1xf32>
    %286 = vector.broadcast %285 : vector<8x1xf32> to vector<8x8xf32>
    %287 = arith.subf %283, %286 : vector<8x8xf32>
    %288 = math.exp %287 : vector<8x8xf32>
    %cst_131 = arith.constant dense<0.000000e+00> : vector<8xf32>
    %289 = vector.multi_reduction <add>, %288, %cst_131 [1] : vector<8x8xf32> to vector<8xf32>
    %290 = vector.shape_cast %289 : vector<8xf32> to vector<8x1xf32>
    %291 = tpu.reciprocal %290 : vector<8x1xf32> -> vector<8x1xf32>
    %292 = vector.broadcast %291 : vector<8x1xf32> to vector<8x8xf32>
    %293 = arith.mulf %288, %292 : vector<8x8xf32>
    %cst_132 = arith.constant dense<0.000000e+00> : vector<8x8xf32>
    %294 = tpu.matmul %293, %247, %cst_132 {dimension_numbers = #tpu.dot_dimension_numbers<[1], [0], [0], [1], [0, 0, 1, 1], [], []>} : vector<8x8xf32>, vector<8x8xf32>, vector<8x8xf32> -> vector<8x8xf32>
    %295 = tpu.concatenate %144, %194, %244, %294 in 1 : vector<8x8xf32>, vector<8x8xf32>, vector<8x8xf32>, vector<8x8xf32> -> vector<8x32xf32>
    %c3_133 = arith.constant 3 : index
    %c0_134 = arith.constant 0 : index
    %c0_135 = arith.constant 0 : index
    %296 = vector.load %arg4[%c3_133, %c0_134, %c0_135] : memref<4x32x32xf32, #tpu.memory_space<vmem>>, vector<1x32x32xf32>
    %297 = vector.shape_cast %296 : vector<1x32x32xf32> to vector<32x32xf32>
    %cst_136 = arith.constant dense<0.000000e+00> : vector<8x32xf32>
    %298 = tpu.matmul %295, %297, %cst_136 {dimension_numbers = #tpu.dot_dimension_numbers<[1], [0], [0], [1], [0, 0, 1, 1], [], []>} : vector<8x32xf32>, vector<32x32xf32>, vector<8x32xf32> -> vector<8x32xf32>
    %c3_137 = arith.constant 3 : index
    %c0_138 = arith.constant 0 : index
    %c0_139 = arith.constant 0 : index
    %299 = vector.load %arg5[%c3_137, %c0_138, %c0_139] : memref<4x1x32xf32, #tpu.memory_space<vmem>>, vector<1x1x32xf32>
    %300 = vector.shape_cast %299 : vector<1x1x32xf32> to vector<1x32xf32>
    %301 = vector.broadcast %300 : vector<1x32xf32> to vector<8x32xf32>
    %302 = arith.addf %298, %301 : vector<8x32xf32>
    %c0_140 = arith.constant 0 : index
    %c0_141 = arith.constant 0 : index
    %c0_142 = arith.constant 0 : index
    %303 = vector.load %arg11[%c0_140, %c0_141, %c0_142] : memref<1x8x32xf32, #tpu.memory_space<vmem>>, vector<1x8x32xf32>
    %304 = vector.shape_cast %303 : vector<1x8x32xf32> to vector<8x32xf32>
    %305 = vector.shape_cast %302 : vector<8x32xf32> to vector<1x8x32xf32>
    tpu.vector_store %arg11[%c0_140, %c0_141, %c0_142], %305 {strides = array<i32>} : memref<1x8x32xf32, #tpu.memory_space<vmem>>, vector<1x8x32xf32>,
    return
  }
  func.func @transform_0(%arg0: i32) -> (i32, i32, i32) {
    %c0_i32 = arith.constant 0 : i32
    %c0_i32_0 = arith.constant 0 : i32
    %c0_i32_1 = arith.constant 0 : i32
    return %arg0, %c0_i32, %c0_i32_0 : i32, i32, i32
  }
  func.func @transform_1(%arg0: i32) -> (i32, i32, i32) {
    %c0_i32 = arith.constant 0 : i32
    %c0_i32_0 = arith.constant 0 : i32
    %c0_i32_1 = arith.constant 0 : i32
    return %arg0, %c0_i32, %c0_i32_0 : i32, i32, i32
  }
  func.func @transform_2(%arg0: i32) -> (i32, i32, i32) {
    %c0_i32 = arith.constant 0 : i32
    %c0_i32_0 = arith.constant 0 : i32
    %c0_i32_1 = arith.constant 0 : i32
    return %arg0, %c0_i32, %c0_i32_0 : i32, i32, i32
  }
  func.func @transform_3(%arg0: i32) -> (i32, i32, i32) {
    %c0_i32 = arith.constant 0 : i32
    %c0_i32_0 = arith.constant 0 : i32
    %c0_i32_1 = arith.constant 0 : i32
    %c0_i32_2 = arith.constant 0 : i32
    return %c0_i32, %c0_i32_0, %c0_i32_1 : i32, i32, i32
  }
  func.func @transform_4(%arg0: i32) -> (i32, i32, i32) {
    %c0_i32 = arith.constant 0 : i32
    %c0_i32_0 = arith.constant 0 : i32
    %c0_i32_1 = arith.constant 0 : i32
    %c0_i32_2 = arith.constant 0 : i32
    return %c0_i32, %c0_i32_0, %c0_i32_1 : i32, i32, i32
  }
  func.func @transform_5(%arg0: i32) -> (i32, i32, i32) {
    %c0_i32 = arith.constant 0 : i32
    %c0_i32_0 = arith.constant 0 : i32
    %c0_i32_1 = arith.constant 0 : i32
    return %arg0, %c0_i32, %c0_i32_0 : i32, i32, i32
  }
  func.func @transform_6(%arg0: i32) -> i32 {
    %c0_i32 = arith.constant 0 : i32
    %c0_i32_0 = arith.constant 0 : i32
    return %c0_i32 : i32
  }
  func.func @transform_7(%arg0: i32) -> i32 {
    %c0_i32 = arith.constant 0 : i32
    %c0_i32_0 = arith.constant 0 : i32
    return %c0_i32 : i32
  }
  func.func @transform_8(%arg0: i32) -> (i32, i32) {
    %c0_i32 = arith.constant 0 : i32
    %c0_i32_0 = arith.constant 0 : i32
    %c0_i32_1 = arith.constant 0 : i32
    return %c0_i32, %c0_i32_0 : i32, i32
  }
  func.func @transform_9(%arg0: i32) -> i32 {
    %c0_i32 = arith.constant 0 : i32
    %c0_i32_0 = arith.constant 0 : i32
    return %c0_i32 : i32
  }
  func.func @transform_10(%arg0: i32) -> (i32, i32, i32) {
    %c0_i32 = arith.constant 0 : i32
    %c0_i32_0 = arith.constant 0 : i32
    %c0_i32_1 = arith.constant 0 : i32
    return %arg0, %c0_i32, %c0_i32_0 : i32, i32, i32
  }
}

</mosaic_0001>

<llo_original>
// kernel: tpu_custom_call.1
$region0: #{tpu_custom_call.1}
  #allocation0 [shape = 'u32[]', space=smem, size = 0x4, offset = 0x4, fixed_abs, tag = 'smem constant byte address 0x4 - core index']
  #allocation1 [shape = 'u32[144,128]{1,0:T(1,128)}', space=vmem, size = 0x12000, scoped, tag = 'internal scratch']
  %s0 = inlined_call_operand.hbm [shape: f32[2,8,32], index: 0, kind: input, shape index: {}]
  %s1 = inlined_call_operand.hbm [shape: f32[2,8,32], index: 1, kind: input, shape index: {}]
  %s2 = inlined_call_operand.hbm [shape: f32[2,8,32], index: 2, kind: input, shape index: {}]
  %s3 = inlined_call_operand.hbm [shape: f32[4,32,32], index: 3, kind: input, shape index: {}]
  %s4 = inlined_call_operand.hbm [shape: f32[4,1,32], index: 4, kind: input, shape index: {}]
  %s5 = inlined_call_operand.vmem [shape: f32[2,8,8], index: 5, kind: input, shape index: {}]
  %s6 = inlined_call_operand.vmem [shape: f32[8], index: 6, kind: input, shape index: {}]
  %s7 = inlined_call_operand.vmem [shape: f32[8], index: 7, kind: input, shape index: {}]
  %s8 = inlined_call_operand.vmem [shape: f32[4,8], index: 8, kind: input, shape index: {}]
  %s9 = inlined_call_operand.vmem [shape: f32[4], index: 9, kind: input, shape index: {}]
  %s10 = inlined_call_operand.hbm [shape: f32[2,8,32], index: 10, kind: output, shape index: {}]
  %s11 = sld [smem:[#allocation0]]
  $region109: #{tpu_custom_call.1} parent=0
    _
  %s13 = ssub.s32 1, %s11
  %s14 = scalar_select 0, %s13, %s11
  $region1: #{tpu_custom_call.1} parent=0
    #allocation2 [shape = 'u8[8192]{0}', space=vmem, size = 0x2000, scoped, tag = 'input window, operand 0']
    #allocation3 [shape = 's32[2]{0}', space=sflag, size = 0x8, scoped, tag = 'scoped memory for tpu_custom_call.1']
    #allocation4 [shape = 's32[2]{0}', space=sflag, size = 0x8, scoped, tag = 'scoped memory for tpu_custom_call.1']
    #allocation5 [shape = 's32[2]{0}', space=sflag, size = 0x8, scoped, tag = 'scoped memory for tpu_custom_call.1']
    #allocation6 [shape = 'u8[8192]{0}', space=vmem, size = 0x2000, scoped, tag = 'input window, operand 1']
    #allocation7 [shape = 's32[2]{0}', space=sflag, size = 0x8, scoped, tag = 'scoped memory for tpu_custom_call.1']
    #allocation8 [shape = 'u8[8192]{0}', space=vmem, size = 0x2000, scoped, tag = 'input window, operand 2']
    #allocation9 [shape = 'u8[65536]{0}', space=vmem, size = 0x10000, scoped, tag = 'input window, operand 3, single buffered']
    #allocation10 [shape = 's32[1]{0}', space=sflag, size = 0x4, scoped, tag = 'scoped memory for tpu_custom_call.1']
    #allocation11 [shape = 'u8[2048]{0}', space=vmem, size = 0x800, scoped, tag = 'input window, operand 4, single buffered']
    #allocation12 [shape = 'u8[512]{0}', space=smem, size = 0x200, scoped, tag = 'input window, operand 6, single buffered']
    #allocation13 [shape = 'u8[512]{0}', space=smem, size = 0x200, scoped, tag = 'input window, operand 7, single buffered']
    #allocation14 [shape = 's32[1]{0}', space=sflag, size = 0x4, scoped, tag = 'scoped memory for tpu_custom_call.1']
    #allocation15 [shape = 'u8[2048]{0}', space=smem, size = 0x800, scoped, tag = 'input window, operand 8, single buffered']
    #allocation16 [shape = 'u8[512]{0}', space=smem, size = 0x200, scoped, tag = 'input window, operand 9, single buffered']
    #allocation17 [shape = 's32[1]{0}', space=sflag, size = 0x4, scoped, tag = 'scoped memory for tpu_custom_call.1']
    #allocation18 [shape = 'u8[8192]{0}', space=vmem, size = 0x2000, scoped, tag = 'output window, operand 0']
    %15 = vsyncpa [#allocation3], 0
    %s16 = scalar_lea.sflag [#allocation3], 1
    %17 = vsyncpa %s16, 0
    %18 = vsyncpa [#allocation7], 0
    %s19 = scalar_lea.sflag [#allocation7], 1
    %20 = vsyncpa %s19, 0
    %21 = vsyncpa [#allocation10], 0
    %22 = vsyncpa [#allocation5], 0
    %23 = vsyncpa [#allocation14], 0
    %24 = vsyncpa [#allocation17], 0
    %25 = vsyncpa [#allocation4], 0
    %s26 = scalar_lea.sflag [#allocation4], 1
    %27 = vsyncpa %s26, 0
    loop: start=0, step=1, limit=4
    $region2: #{tpu_custom_call.1} parent=1 // loop_pre_header
      _
    $region3: #{tpu_custom_call.1} parent=1 // loop_header
      %s29 = sphi 0, %s33
      %p30 = scmp.ge.s32.totalorder %s29, 4
      %s39 = sphi 0, %s41
      %s42 = sphi 0, %s39
      %s43 = sphi 0, %s42
      %s59 = sphi 0, %s43
      %s65 = sphi 0, %s67
      %s68 = sphi 0, %s65
      %s69 = sphi 0, %s68
      %s85 = sphi 0, %s69
      %s91 = sphi 0, %s93
      %s94 = sphi 0, %s91
      %s95 = sphi 0, %s94
      %s111 = sphi 0, %s95
      %s115 = sphi 0, %s115
      %s117 = sphi 0, %s115
      %s118 = sphi 0, %s117
      %s132 = sphi 0, %s118
      %s136 = sphi 0, %s136
      %s138 = sphi 0, %s136
      %s139 = sphi 0, %s138
      %s153 = sphi 0, %s139
      %s159 = sphi 0, %s161
      %s162 = sphi 0, %s159
      %s163 = sphi 0, %s162
      %s179 = sphi 0, %s163
      %s183 = sphi 0, %s183
      %s185 = sphi 0, %s183
      %s186 = sphi 0, %s185
      %s200 = sphi 0, %s186
      %s204 = sphi 0, %s204
      %s206 = sphi 0, %s204
      %s207 = sphi 0, %s206
      %s221 = sphi 0, %s207
      %s225 = sphi 0, %s225
      %s227 = sphi 0, %s225
      %s228 = sphi 0, %s227
      %s242 = sphi 0, %s228
      %s246 = sphi 0, %s246
      %s248 = sphi 0, %s246
      %s249 = sphi 0, %s248
      %s263 = sphi 0, %s249
      %s269 = sphi 0, %s271
      %s272 = sphi 0, %s269
      %s273 = sphi 0, %s272
      %s289 = sphi 0, %s273
    $region4: #{tpu_custom_call.1} parent=1 // loop_header_branch
      %32 = sbr.rel (%p30) target = $region8
    $region5: #{tpu_custom_call.1} parent=1 // loop_body
      %s34 = ssub.s32 %s29, 1
      %s35 = ssub.s32 %s29, 2
      %s36 = sadd.s32 %s29, 1
      %s37 = ssub.s32 %s29, %s36
      %p38 = scmp.eq.s32.totalorder %s37, 0
      %s40 = sadd.s32 %s39, 1
      %s41 = scalar_select %p38, %s39, %s40
      %p44 = pneg %p38
      %p45 = scmp.eq.s32.totalorder %s29, 1
      %p46 = por %p44, %p45
      %p47 = scmp.ne.s32.totalorder %s39, %s42
      %p48 = scmp.eq.s32.totalorder %s29, 0
      %p49 = por %p47, %p48
      %p50 = scmp.ne.s32.totalorder %s39, %s42
      %p51 = scmp.eq.s32.totalorder %s34, 1
      %p52 = por %p50, %p51
      %p53 = scmp.ne.s32.totalorder %s42, %s43
      %p54 = scmp.eq.s32.totalorder %s34, 0
      %p55 = por %p53, %p54
      %p56 = scmp.ne.s32.totalorder %s42, %s43
      %p57 = scmp.eq.s32.totalorder %s35, 1
      %p58 = por %p56, %p57
      %p60 = scmp.ne.s32.totalorder %s43, %s59
      %p61 = scmp.eq.s32.totalorder %s35, 0
      %p62 = por %p60, %p61
      %s63 = ssub.s32 %s29, %s36
      %p64 = scmp.eq.s32.totalorder %s63, 0
      %s66 = sadd.s32 %s65, 1
      %s67 = scalar_select %p64, %s65, %s66
      %p70 = pneg %p64
      %p71 = scmp.eq.s32.totalorder %s29, 1
      %p72 = por %p70, %p71
      %p73 = scmp.ne.s32.totalorder %s65, %s68
      %p74 = scmp.eq.s32.totalorder %s29, 0
      %p75 = por %p73, %p74
      %p76 = scmp.ne.s32.totalorder %s65, %s68
      %p77 = scmp.eq.s32.totalorder %s34, 1
      %p78 = por %p76, %p77
      %p79 = scmp.ne.s32.totalorder %s68, %s69
      %p80 = scmp.eq.s32.totalorder %s34, 0
      %p81 = por %p79, %p80
      %p82 = scmp.ne.s32.totalorder %s68, %s69
      %p83 = scmp.eq.s32.totalorder %s35, 1
      %p84 = por %p82, %p83
      %p86 = scmp.ne.s32.totalorder %s69, %s85
      %p87 = scmp.eq.s32.totalorder %s35, 0
      %p88 = por %p86, %p87
      %s89 = ssub.s32 %s29, %s36
      %p90 = scmp.eq.s32.totalorder %s89, 0
      %s92 = sadd.s32 %s91, 1
      %s93 = scalar_select %p90, %s91, %s92
      %p96 = pneg %p90
      %p97 = scmp.eq.s32.totalorder %s29, 1
      %p98 = por %p96, %p97
      %p99 = scmp.ne.s32.totalorder %s91, %s94
      %p100 = scmp.eq.s32.totalorder %s29, 0
      %p101 = por %p99, %p100
      %p102 = scmp.ne.s32.totalorder %s91, %s94
      %p103 = scmp.eq.s32.totalorder %s34, 1
      %p104 = por %p102, %p103
      %p105 = scmp.ne.s32.totalorder %s94, %s95
      %p106 = scmp.eq.s32.totalorder %s34, 0
      %p107 = por %p105, %p106
      %p108 = scmp.ne.s32.totalorder %s94, %s95
      %p109 = scmp.eq.s32.totalorder %s35, 1
      %p110 = por %p108, %p109
      %p112 = scmp.ne.s32.totalorder %s95, %s111
      %p113 = scmp.eq.s32.totalorder %s35, 0
      %p114 = por %p112, %p113
      %s116 = sadd.s32 %s115, 1
      %p119 = scmp.eq.s32.totalorder %s29, 1
      %p120 = scmp.ne.s32.totalorder %s115, %s117
      %p121 = scmp.eq.s32.totalorder %s29, 0
      %p122 = por %p120, %p121
      %p123 = scmp.ne.s32.totalorder %s115, %s117
      %p124 = scmp.eq.s32.totalorder %s34, 1
      %p125 = por %p123, %p124
      %p126 = scmp.ne.s32.totalorder %s117, %s118
      %p127 = scmp.eq.s32.totalorder %s34, 0
      %p128 = por %p126, %p127
      %p129 = scmp.ne.s32.totalorder %s117, %s118
      %p130 = scmp.eq.s32.totalorder %s35, 1
      %p131 = por %p129, %p130
      %p133 = scmp.ne.s32.totalorder %s118, %s132
      %p134 = scmp.eq.s32.totalorder %s35, 0
      %p135 = por %p133, %p134
      %s137 = sadd.s32 %s136, 1
      %p140 = scmp.eq.s32.totalorder %s29, 1
      %p141 = scmp.ne.s32.totalorder %s136, %s138
      %p142 = scmp.eq.s32.totalorder %s29, 0
      %p143 = por %p141, %p142
      %p144 = scmp.ne.s32.totalorder %s136, %s138
      %p145 = scmp.eq.s32.totalorder %s34, 1
      %p146 = por %p144, %p145
      %p147 = scmp.ne.s32.totalorder %s138, %s139
      %p148 = scmp.eq.s32.totalorder %s34, 0
      %p149 = por %p147, %p148
      %p150 = scmp.ne.s32.totalorder %s138, %s139
      %p151 = scmp.eq.s32.totalorder %s35, 1
      %p152 = por %p150, %p151
      %p154 = scmp.ne.s32.totalorder %s139, %s153
      %p155 = scmp.eq.s32.totalorder %s35, 0
      %p156 = por %p154, %p155
      %s157 = ssub.s32 %s29, %s36
      %p158 = scmp.eq.s32.totalorder %s157, 0
      %s160 = sadd.s32 %s159, 1
      %s161 = scalar_select %p158, %s159, %s160
      %p164 = pneg %p158
      %p165 = scmp.eq.s32.totalorder %s29, 1
      %p166 = por %p164, %p165
      %p167 = scmp.ne.s32.totalorder %s159, %s162
      %p168 = scmp.eq.s32.totalorder %s29, 0
      %p169 = por %p167, %p168
      %p170 = scmp.ne.s32.totalorder %s159, %s162
      %p171 = scmp.eq.s32.totalorder %s34, 1
      %p172 = por %p170, %p171
      %p173 = scmp.ne.s32.totalorder %s162, %s163
      %p174 = scmp.eq.s32.totalorder %s34, 0
      %p175 = por %p173, %p174
      %p176 = scmp.ne.s32.totalorder %s162, %s163
      %p177 = scmp.eq.s32.totalorder %s35, 1
      %p178 = por %p176, %p177
      %p180 = scmp.ne.s32.totalorder %s163, %s179
      %p181 = scmp.eq.s32.totalorder %s35, 0
      %p182 = por %p180, %p181
      %s184 = sadd.s32 %s183, 1
      %p187 = scmp.eq.s32.totalorder %s29, 1
      %p188 = scmp.ne.s32.totalorder %s183, %s185
      %p189 = scmp.eq.s32.totalorder %s29, 0
      %p190 = por %p188, %p189
      %p191 = scmp.ne.s32.totalorder %s183, %s185
      %p192 = scmp.eq.s32.totalorder %s34, 1
      %p193 = por %p191, %p192
      %p194 = scmp.ne.s32.totalorder %s185, %s186
      %p195 = scmp.eq.s32.totalorder %s34, 0
      %p196 = por %p194, %p195
      %p197 = scmp.ne.s32.totalorder %s185, %s186
      %p198 = scmp.eq.s32.totalorder %s35, 1
      %p199 = por %p197, %p198
      %p201 = scmp.ne.s32.totalorder %s186, %s200
      %p202 = scmp.eq.s32.totalorder %s35, 0
      %p203 = por %p201, %p202
      %s205 = sadd.s32 %s204, 1
      %p208 = scmp.eq.s32.totalorder %s29, 1
      %p209 = scmp.ne.s32.totalorder %s204, %s206
      %p210 = scmp.eq.s32.totalorder %s29, 0
      %p211 = por %p209, %p210
      %p212 = scmp.ne.s32.totalorder %s204, %s206
      %p213 = scmp.eq.s32.totalorder %s34, 1
      %p214 = por %p212, %p213
      %p215 = scmp.ne.s32.totalorder %s206, %s207
      %p216 = scmp.eq.s32.totalorder %s34, 0
      %p217 = por %p215, %p216
      %p218 = scmp.ne.s32.totalorder %s206, %s207
      %p219 = scmp.eq.s32.totalorder %s35, 1
      %p220 = por %p218, %p219
      %p222 = scmp.ne.s32.totalorder %s207, %s221
      %p223 = scmp.eq.s32.totalorder %s35, 0
      %p224 = por %p222, %p223
      %s226 = sadd.s32 %s225, 1
      %p229 = scmp.eq.s32.totalorder %s29, 1
      %p230 = scmp.ne.s32.totalorder %s225, %s227
      %p231 = scmp.eq.s32.totalorder %s29, 0
      %p232 = por %p230, %p231
      %p233 = scmp.ne.s32.totalorder %s225, %s227
      %p234 = scmp.eq.s32.totalorder %s34, 1
      %p235 = por %p233, %p234
      %p236 = scmp.ne.s32.totalorder %s227, %s228
      %p237 = scmp.eq.s32.totalorder %s34, 0
      %p238 = por %p236, %p237
      %p239 = scmp.ne.s32.totalorder %s227, %s228
      %p240 = scmp.eq.s32.totalorder %s35, 1
      %p241 = por %p239, %p240
      %p243 = scmp.ne.s32.totalorder %s228, %s242
      %p244 = scmp.eq.s32.totalorder %s35, 0
      %p245 = por %p243, %p244
      %s247 = sadd.s32 %s246, 1
      %p250 = scmp.eq.s32.totalorder %s29, 1
      %p251 = scmp.ne.s32.totalorder %s246, %s248
      %p252 = scmp.eq.s32.totalorder %s29, 0
      %p253 = por %p251, %p252
      %p254 = scmp.ne.s32.totalorder %s246, %s248
      %p255 = scmp.eq.s32.totalorder %s34, 1
      %p256 = por %p254, %p255
      %p257 = scmp.ne.s32.totalorder %s248, %s249
      %p258 = scmp.eq.s32.totalorder %s34, 0
      %p259 = por %p257, %p258
      %p260 = scmp.ne.s32.totalorder %s248, %s249
      %p261 = scmp.eq.s32.totalorder %s35, 1
      %p262 = por %p260, %p261
      %p264 = scmp.ne.s32.totalorder %s249, %s263
      %p265 = scmp.eq.s32.totalorder %s35, 0
      %p266 = por %p264, %p265
      %s267 = ssub.s32 %s29, %s36
      %p268 = scmp.eq.s32.totalorder %s267, 0
      %s270 = sadd.s32 %s269, 1
      %s271 = scalar_select %p268, %s269, %s270
      %p274 = pneg %p268
      %p275 = scmp.eq.s32.totalorder %s29, 1
      %p276 = por %p274, %p275
      %p277 = scmp.ne.s32.totalorder %s269, %s272
      %p278 = scmp.eq.s32.totalorder %s29, 0
      %p279 = por %p277, %p278
      %p280 = scmp.ne.s32.totalorder %s269, %s272
      %p281 = scmp.eq.s32.totalorder %s34, 1
      %p282 = por %p280, %p281
      %p283 = scmp.ne.s32.totalorder %s272, %s273
      %p284 = scmp.eq.s32.totalorder %s34, 0
      %p285 = por %p283, %p284
      %p286 = scmp.ne.s32.totalorder %s272, %s273
      %p287 = scmp.eq.s32.totalorder %s35, 1
      %p288 = por %p286, %p287
      %p290 = scmp.ne.s32.totalorder %s273, %s289
      %p291 = scmp.eq.s32.totalorder %s35, 0
      %p292 = por %p290, %p291
      %p293 = scmp.le.s32.totalorder 1, %s29
      %p294 = scmp.lt.s32.totalorder %s29, 3
      %p295 = pnand %p293, %p294
      %p296 = pneg %p295
      // Predicated region
      $region9: #{tpu_custom_call.1} parent=5 // pred_check
        _
      $region10: #{tpu_custom_call.1} parent=5 // pred_check_branch
        %298 = sbr.rel (%p295) target = $region12
      $region11: #{tpu_custom_call.1} parent=5 // pred_region
        %s299 = ssub.s32 %s29, 1
        // Predicated region
        $region13: #{tpu_custom_call.1} parent=11 // pred_check
          %p300 = pneg %p128
        $region14: #{tpu_custom_call.1} parent=11 // pred_check_branch
          %302 = sbr.rel (%p300) target = $region16
        $region15: #{tpu_custom_call.1} parent=11 // pred_region
          %s304 = ssub.s32 2048, 2048
          %305 = vsyncadd [#allocation10], %s304
          %s306 = sshll.u32 [#allocation9], 4
          %s307 = int_to_ptr.vmem [resolvable:$true] %s306
          %312 = dma.hbm_to_vmem [thread:$0]  %s3, 2048, %s307, [#allocation10], 128, 128, 8
        $region16: #{tpu_custom_call.1} parent=11 // pred_fallthru
          _
        // Predicated region
        $region17: #{tpu_custom_call.1} parent=11 // pred_check
          %p313 = pneg %p149
        $region18: #{tpu_custom_call.1} parent=11 // pred_check_branch
          %315 = sbr.rel (%p313) target = $region20
        $region19: #{tpu_custom_call.1} parent=11 // pred_region
          %s317 = ssub.s32 64, 64
          %318 = vsyncadd [#allocation10], %s317
          %s319 = sshll.u32 [#allocation11], 4
          %s320 = int_to_ptr.vmem [resolvable:$true] %s319
          %325 = dma.hbm_to_vmem [thread:$0]  %s4, 64, %s320, [#allocation10], 16, 16, 1
        $region20: #{tpu_custom_call.1} parent=11 // pred_fallthru
          _
        // Predicated region
        $region21: #{tpu_custom_call.1} parent=11 // pred_check
          %p326 = pneg %p196
        $region22: #{tpu_custom_call.1} parent=11 // pred_check_branch
          %328 = sbr.rel (%p326) target = $region24
        $region23: #{tpu_custom_call.1} parent=11 // pred_region
          %s330 = ssub.s32 16, 16
          %331 = vsyncadd [#allocation5], %s330
          %s333 = sshll.u32 %s6, 4
          %s334 = int_to_ptr.vmem [resolvable:$true] %s333
          %336 = dma.vmem_to_smem %s334, 16, [#allocation12], [#allocation5]
        $region24: #{tpu_custom_call.1} parent=11 // pred_fallthru
          _
        // Predicated region
        $region25: #{tpu_custom_call.1} parent=11 // pred_check
          %p337 = pneg %p217
        $region26: #{tpu_custom_call.1} parent=11 // pred_check_branch
          %339 = sbr.rel (%p337) target = $region28
        $region27: #{tpu_custom_call.1} parent=11 // pred_region
          %s341 = ssub.s32 16, 16
          %342 = vsyncadd [#allocation14], %s341
          %s344 = sshll.u32 %s7, 4
          %s345 = int_to_ptr.vmem [resolvable:$true] %s344
          %347 = dma.vmem_to_smem %s345, 16, [#allocation13], [#allocation14]
        $region28: #{tpu_custom_call.1} parent=11 // pred_fallthru
          _
        // Predicated region
        $region29: #{tpu_custom_call.1} parent=11 // pred_check
          %p348 = pneg %p238
        $region30: #{tpu_custom_call.1} parent=11 // pred_check_branch
          %350 = sbr.rel (%p348) target = $region32
        $region31: #{tpu_custom_call.1} parent=11 // pred_region
          %s352 = ssub.s32 64, 64
          %353 = vsyncadd [#allocation14], %s352
          %s355 = sshll.u32 %s8, 4
          %s356 = int_to_ptr.vmem [resolvable:$true] %s355
          %358 = dma.vmem_to_smem %s356, 64, [#allocation15], [#allocation14]
        $region32: #{tpu_custom_call.1} parent=11 // pred_fallthru
          _
        // Predicated region
        $region33: #{tpu_custom_call.1} parent=11 // pred_check
          %p359 = pneg %p259
        $region34: #{tpu_custom_call.1} parent=11 // pred_check_branch
          %361 = sbr.rel (%p359) target = $region36
        $region35: #{tpu_custom_call.1} parent=11 // pred_region
          %s363 = ssub.s32 16, 16
          %364 = vsyncadd [#allocation17], %s363
          %s366 = sshll.u32 %s9, 4
          %s367 = int_to_ptr.vmem [resolvable:$true] %s366
          %369 = dma.vmem_to_smem %s367, 16, [#allocation16], [#allocation17]
        $region36: #{tpu_custom_call.1} parent=11 // pred_fallthru
          _
      $region12: #{tpu_custom_call.1} parent=5 // pred_fallthru
        _
      %p370 = scmp.lt.s32.totalorder %s29, 2
      // Predicated region
      $region37: #{tpu_custom_call.1} parent=5 // pred_check
        %p371 = pneg %p370
      $region38: #{tpu_custom_call.1} parent=5 // pred_check_branch
        %373 = sbr.rel (%p371) target = $region40
      $region39: #{tpu_custom_call.1} parent=5 // pred_region
        // Predicated region
        $region41: #{tpu_custom_call.1} parent=39 // pred_check
          %p374 = pneg %p49
        $region42: #{tpu_custom_call.1} parent=39 // pred_check_branch
          %376 = sbr.rel (%p374) target = $region44
        $region43: #{tpu_custom_call.1} parent=39 // pred_region
          %s377 = sand.u32 %s39, 1
          %s378 = scalar_lea.sflag [#allocation3], %s377
          %s379 = sand.u32 %s39, 1
          %s380 = smul.addr %s379, 8
          %s381 = scalar_lea.vmem [#allocation2], %s380
          %s383 = ssub.s32 128, 128
          %384 = vsyncadd %s378, %s383
          %s385 = smul.addr %s29, 128
          %s386 = scalar_lea.hbm %s0, %s385
          %s388 = sshll.u32 %s381, 4
          %s389 = int_to_ptr.vmem [resolvable:$true] %s388
          %391 = dma.hbm_to_vmem [thread:$0]  %s386, 128, %s389, %s378
        $region44: #{tpu_custom_call.1} parent=39 // pred_fallthru
          _
        // Predicated region
        $region45: #{tpu_custom_call.1} parent=39 // pred_check
          %p392 = pneg %p75
        $region46: #{tpu_custom_call.1} parent=39 // pred_check_branch
          %394 = sbr.rel (%p392) target = $region48
        $region47: #{tpu_custom_call.1} parent=39 // pred_region
          %s395 = sand.u32 %s29, 1
          %s396 = scalar_lea.sflag [#allocation7], %s395
          %s397 = sand.u32 %s65, 1
          %s398 = smul.addr %s397, 8
          %s399 = scalar_lea.vmem [#allocation6], %s398
          %s401 = ssub.s32 128, 128
          %402 = vsyncadd %s396, %s401
          %s403 = smul.addr %s29, 128
          %s404 = scalar_lea.hbm %s1, %s403
          %s406 = sshll.u32 %s399, 4
          %s407 = int_to_ptr.vmem [resolvable:$true] %s406
          %409 = dma.hbm_to_vmem [thread:$0]  %s404, 128, %s407, %s396
        $region48: #{tpu_custom_call.1} parent=39 // pred_fallthru
          _
        // Predicated region
        $region49: #{tpu_custom_call.1} parent=39 // pred_check
          %p410 = pneg %p101
        $region50: #{tpu_custom_call.1} parent=39 // pred_check_branch
          %412 = sbr.rel (%p410) target = $region52
        $region51: #{tpu_custom_call.1} parent=39 // pred_region
          %s413 = sand.u32 %s29, 1
          %s414 = scalar_lea.sflag [#allocation7], %s413
          %s415 = sand.u32 %s91, 1
          %s416 = smul.addr %s415, 8
          %s417 = scalar_lea.vmem [#allocation8], %s416
          %s419 = ssub.s32 128, 128
          %420 = vsyncadd %s414, %s419
          %s421 = smul.addr %s29, 128
          %s422 = scalar_lea.hbm %s2, %s421
          %s424 = sshll.u32 %s417, 4
          %s425 = int_to_ptr.vmem [resolvable:$true] %s424
          %427 = dma.hbm_to_vmem [thread:$0]  %s422, 128, %s425, %s414
        $region52: #{tpu_custom_call.1} parent=39 // pred_fallthru
          _
        // Predicated region
        $region53: #{tpu_custom_call.1} parent=39 // pred_check
          %p428 = pneg %p169
        $region54: #{tpu_custom_call.1} parent=39 // pred_check_branch
          %430 = sbr.rel (%p428) target = $region56
        $region55: #{tpu_custom_call.1} parent=39 // pred_region
          %p431 = scmp.lt.s32.totalorder %s29, 1
          %s432 = scalar_select %p431, %s29, 1
          %s433 = smul.addr %s432, 8
          %s434 = scalar_lea.vmem %s5, %s433
        $region56: #{tpu_custom_call.1} parent=39 // pred_fallthru
          _
      $region40: #{tpu_custom_call.1} parent=5 // pred_fallthru
        _
      %p435 = scmp.le.s32.totalorder 1, %s29
      %p436 = scmp.lt.s32.totalorder %s29, 3
      %p437 = pnand %p435, %p436
      %p438 = pneg %p437
      // Predicated region
      $region57: #{tpu_custom_call.1} parent=5 // pred_check
        _
      $region58: #{tpu_custom_call.1} parent=5 // pred_check_branch
        %440 = sbr.rel (%p437) target = $region60
      $region59: #{tpu_custom_call.1} parent=5 // pred_region
        %s441 = ssub.s32 %s29, 1
        %s442 = sand.u32 %s42, 1
        %s443 = scalar_lea.sflag [#allocation3], %s442
        %s444 = sand.u32 %s42, 1
        %s445 = smul.addr %s444, 8
        %s446 = scalar_lea.vmem [#allocation2], %s445
        // Predicated region
        $region61: #{tpu_custom_call.1} parent=59 // pred_check
          %p447 = pneg %p55
        $region62: #{tpu_custom_call.1} parent=59 // pred_check_branch
          %449 = sbr.rel (%p447) target = $region64
        $region63: #{tpu_custom_call.1} parent=59 // pred_region
          %450 = dma.done %s443, 128
        $region64: #{tpu_custom_call.1} parent=59 // pred_fallthru
          _
        %s451 = sand.u32 %s34, 1
        %s452 = scalar_lea.sflag [#allocation7], %s451
        %s453 = sand.u32 %s68, 1
        %s454 = smul.addr %s453, 8
        %s455 = scalar_lea.vmem [#allocation6], %s454
        // Predicated region
        $region65: #{tpu_custom_call.1} parent=59 // pred_check
          %p456 = pneg %p81
        $region66: #{tpu_custom_call.1} parent=59 // pred_check_branch
          %458 = sbr.rel (%p456) target = $region68
        $region67: #{tpu_custom_call.1} parent=59 // pred_region
          %459 = dma.done %s452, 128
        $region68: #{tpu_custom_call.1} parent=59 // pred_fallthru
          _
        %s460 = sand.u32 %s34, 1
        %s461 = scalar_lea.sflag [#allocation7], %s460
        %s462 = sand.u32 %s94, 1
        %s463 = smul.addr %s462, 8
        %s464 = scalar_lea.vmem [#allocation8], %s463
        // Predicated region
        $region69: #{tpu_custom_call.1} parent=59 // pred_check
          %p465 = pneg %p107
        $region70: #{tpu_custom_call.1} parent=59 // pred_check_branch
          %467 = sbr.rel (%p465) target = $region72
        $region71: #{tpu_custom_call.1} parent=59 // pred_region
          %468 = dma.done %s461, 128
        $region72: #{tpu_custom_call.1} parent=59 // pred_fallthru
          _
        // Predicated region
        $region73: #{tpu_custom_call.1} parent=59 // pred_check
          %p469 = pneg %p128
        $region74: #{tpu_custom_call.1} parent=59 // pred_check_branch
          %471 = sbr.rel (%p469) target = $region76
        $region75: #{tpu_custom_call.1} parent=59 // pred_region
          %472 = dma.done [#allocation10], 2048
        $region76: #{tpu_custom_call.1} parent=59 // pred_fallthru
          _
        // Predicated region
        $region77: #{tpu_custom_call.1} parent=59 // pred_check
          %p473 = pneg %p149
        $region78: #{tpu_custom_call.1} parent=59 // pred_check_branch
          %475 = sbr.rel (%p473) target = $region80
        $region79: #{tpu_custom_call.1} parent=59 // pred_region
          %476 = dma.done [#allocation10], 64
        $region80: #{tpu_custom_call.1} parent=59 // pred_fallthru
          _
        // Predicated region
        $region81: #{tpu_custom_call.1} parent=59 // pred_check
          %p477 = pneg %p196
        $region82: #{tpu_custom_call.1} parent=59 // pred_check_branch
          %479 = sbr.rel (%p477) target = $region84
        $region83: #{tpu_custom_call.1} parent=59 // pred_region
          %480 = dma.done [#allocation5], 16
        $region84: #{tpu_custom_call.1} parent=59 // pred_fallthru
          _
        // Predicated region
        $region85: #{tpu_custom_call.1} parent=59 // pred_check
          %p481 = pneg %p217
        $region86: #{tpu_custom_call.1} parent=59 // pred_check_branch
          %483 = sbr.rel (%p481) target = $region88
        $region87: #{tpu_custom_call.1} parent=59 // pred_region
          %484 = dma.done [#allocation14], 16
        $region88: #{tpu_custom_call.1} parent=59 // pred_fallthru
          _
        // Predicated region
        $region89: #{tpu_custom_call.1} parent=59 // pred_check
          %p485 = pneg %p238
        $region90: #{tpu_custom_call.1} parent=59 // pred_check_branch
          %487 = sbr.rel (%p485) target = $region92
        $region91: #{tpu_custom_call.1} parent=59 // pred_region
          %488 = dma.done [#allocation14], 64
        $region92: #{tpu_custom_call.1} parent=59 // pred_fallthru
          _
        // Predicated region
        $region93: #{tpu_custom_call.1} parent=59 // pred_check
          %p489 = pneg %p259
        $region94: #{tpu_custom_call.1} parent=59 // pred_check_branch
          %491 = sbr.rel (%p489) target = $region96
        $region95: #{tpu_custom_call.1} parent=59 // pred_region
          %492 = dma.done [#allocation17], 16
        $region96: #{tpu_custom_call.1} parent=59 // pred_fallthru
          _
        %493 = sfence
        %s494 = sand.u32 %s42, 1
        %s495 = scalar_lea.sflag [#allocation3], %s494
        %s496 = sand.u32 %s42, 1
        %s497 = smul.addr %s496, 8
        %s498 = scalar_lea.vmem [#allocation2], %s497
        %p499 = pneg %p55
        %p500 = pneg %p52
        %s501 = sand.u32 %s34, 1
        %s502 = scalar_lea.sflag [#allocation7], %s501
        %s503 = sand.u32 %s68, 1
        %s504 = smul.addr %s503, 8
        %s505 = scalar_lea.vmem [#allocation6], %s504
        %p506 = pneg %p81
        %p507 = pneg %p78
        %s508 = sand.u32 %s34, 1
        %s509 = scalar_lea.sflag [#allocation7], %s508
        %s510 = sand.u32 %s94, 1
        %s511 = smul.addr %s510, 8
        %s512 = scalar_lea.vmem [#allocation8], %s511
        %p513 = pneg %p107
        %p514 = pneg %p104
        %p515 = pneg %p128
        %p516 = pneg %p125
        %p517 = pneg %p149
        %p518 = pneg %p146
        %p519 = scmp.lt.s32.totalorder %s34, 1
        %s520 = scalar_select %p519, %s34, 1
        %s521 = smul.addr %s520, 8
        %s522 = scalar_lea.vmem %s5, %s521
        %p523 = pneg %p175
        %p524 = pneg %p172
        %p525 = pneg %p196
        %p526 = pneg %p193
        %p527 = pneg %p217
        %p528 = pneg %p214
        %p529 = pneg %p238
        %p530 = pneg %p235
        %p531 = pneg %p259
        %p532 = pneg %p256
        %p533 = pneg %p285
        %p534 = pneg %p282
        %s535 = sand.u32 %s272, 1
        %s536 = scalar_lea.sflag [#allocation4], %s535
        %s537 = sand.u32 %s272, 1
        %s538 = smul.addr %s537, 8
        %s539 = scalar_lea.vmem [#allocation18], %s538
        %p540 = scmp.lt.s32.totalorder %s34, 1
        %s541 = scalar_select %p540, %s34, 1
        %s542 = smul.addr %s541, 8
        %s543 = scalar_lea.vmem %s5, %s542
        %v544 = vld [vmem:[%s446] sm:$0xff]
        %v545 = vld [vmem:[#allocation9] sm:$0xff]
        %v546 = vld [vmem:[#allocation9 + $0x8] sm:$0xff]
        %v547 = vld [vmem:[#allocation9 + $0x10] sm:$0xff]
        %v548 = vld [vmem:[#allocation9 + $0x18] sm:$0xff]
        %v549 = vld [vmem:[#allocation11] sm:$0x1]
        %v551 = vlaneseq
        %v552 = vshrl.u32 %v551, 7
        %v553 = vsub.s32 0, %v552
        %v554 = vrot.slane %v549, %v553
        %vm556 = vcmask 261120
        %v558 = vsel %vm556, %v544, 0
        %560 = vmatprep.subr.mxu0 0.0
        %561 = vmatpush1.msra.mxu0 %v545
        %562 = vmatprep.subr.mxu0 0.0
        %563 = vmatpush1.msra.mxu0 %v546
        %564 = vmatprep.subr.mxu0 0.0
        %565 = vmatpush1.msra.mxu0 %v547
        %566 = vmatprep.subr.mxu0 0.0
        %567 = vmatpush1.msra.mxu0 %v548
        %568 = vmatprep.subr.mxu0 0.0
        %569 = vmatpush1.msra.mxu0 0.0
        %570 = vmatprep.subr.mxu0 0.0
        %571 = vmatpush1.msra.mxu0 0.0
        %572 = vmatprep.subr.mxu0 0.0
        %573 = vmatpush1.msra.mxu0 0.0
        %574 = vmatprep.subr.mxu0 0.0
        %575 = vmatpush1.msra.mxu0 0.0
        %576 = vmatprep.subr.mxu0 0.0
        %577 = vmatpush1.msra.mxu0 0.0
        %578 = vmatprep.subr.mxu0 0.0
        %579 = vmatpush1.msra.mxu0 0.0
        %580 = vmatprep.subr.mxu0 0.0
        %581 = vmatpush1.msra.mxu0 0.0
        %582 = vmatprep.subr.mxu0 0.0
        %583 = vmatpush1.msra.mxu0 0.0
        %584 = vmatprep.subr.mxu0 0.0
        %585 = vmatpush1.msra.mxu0 0.0
        %586 = vmatprep.subr.mxu0 0.0
        %587 = vmatpush1.msra.mxu0 0.0
        %588 = vmatprep.subr.mxu0 0.0
        %589 = vmatpush1.msra.mxu0 0.0
        %590 = vmatprep.subr.mxu0 0.0
        %591 = vmatpush1.msra.mxu0 0.0
        %592 = vmatprep.subr.mxu0 0.0
        %593 = vmatpush1.msra.mxu0 0.0
        %594 = vmatprep.subr.mxu0 0.0
        %595 = vmatpush1.msra.mxu0 0.0
        %596 = vmatprep.subr.mxu0 0.0
        %597 = vmatpush1.msra.mxu0 0.0
        %598 = vmatprep.subr.mxu0 0.0
        %599 = vmatpush1.msra.mxu0 0.0
        %600 = vmatprep.subr.mxu0 0.0
        %601 = vmatpush1.msra.mxu0 0.0
        %602 = vmatprep.subr.mxu0 0.0
        %603 = vmatpush1.msra.mxu0 0.0
        %604 = vmatprep.subr.mxu0 0.0
        %605 = vmatpush1.msra.mxu0 0.0
        %606 = vmatprep.subr.mxu0 0.0
        %607 = vmatpush1.msra.mxu0 0.0
        %608 = vmatprep.subr.mxu0 0.0
        %609 = vmatpush1.msra.mxu0 0.0
        %610 = vmatprep.subr.mxu0 0.0
        %611 = vmatpush1.msra.mxu0 0.0
        %612 = vmatprep.subr.mxu0 0.0
        %613 = vmatpush1.msra.mxu0 0.0
        %614 = vmatprep.subr.mxu0 0.0
        %615 = vmatpush1.msra.mxu0 0.0
        %616 = vmatprep.subr.mxu0 0.0
        %617 = vmatpush1.msra.mxu0 0.0
        %618 = vmatprep.subr.mxu0 0.0
        %619 = vmatpush1.msra.mxu0 0.0
        %620 = vmatprep.subr.mxu0 0.0
        %621 = vmatpush1.msra.mxu0 0.0
        %622 = vmatprep.subr.mxu0 0.0
        %623 = vmatpush1.msra.mxu0 0.0
        %624 = vmatprep.mubr.f32.mxu0 0.0
        %625 = vmatmul.mubr.f32.gmra.mrb[0].mxu0 %v558
        %v626 = vpop.f32.mrb[0].mxu0
        %v627 = vadd.f32 %v554, %v626
        %v628 = vpop.f32.mrb[0].mxu0
        %629 = vdwg.mxu0
        %v630 = vmul.f32 %v627, 0.35355338
        %v631 = vld [vmem:[%s455] sm:$0xff]
        %s632 = scalar_lea.vmem [#allocation9], 32
        %v633 = vld [vmem:[%s632] sm:$0xff]
        %v634 = vld [vmem:[%s632 + $0x8] sm:$0xff]
        %v635 = vld [vmem:[%s632 + $0x10] sm:$0xff]
        %v636 = vld [vmem:[%s632 + $0x18] sm:$0xff]
        %s637 = scalar_lea.vmem [#allocation11], 1
        %v638 = vld [vmem:[%s637] sm:$0x1]
        %v640 = vlaneseq
        %v641 = vshrl.u32 %v640, 7
        %v642 = vsub.s32 0, %v641
        %v643 = vrot.slane %v638, %v642
        %v646 = vsel %vm556, %v631, 0
        %648 = vmatprep.subr.mxu0 0.0
        %649 = vmatpush1.msra.mxu0 %v633
        %650 = vmatprep.subr.mxu0 0.0
        %651 = vmatpush1.msra.mxu0 %v634
        %652 = vmatprep.subr.mxu0 0.0
        %653 = vmatpush1.msra.mxu0 %v635
        %654 = vmatprep.subr.mxu0 0.0
        %655 = vmatpush1.msra.mxu0 %v636
        %656 = vmatprep.subr.mxu0 0.0
        %657 = vmatpush1.msra.mxu0 0.0
        %658 = vmatprep.subr.mxu0 0.0
        %659 = vmatpush1.msra.mxu0 0.0
        %660 = vmatprep.subr.mxu0 0.0
        %661 = vmatpush1.msra.mxu0 0.0
        %662 = vmatprep.subr.mxu0 0.0
        %663 = vmatpush1.msra.mxu0 0.0
        %664 = vmatprep.subr.mxu0 0.0
        %665 = vmatpush1.msra.mxu0 0.0
        %666 = vmatprep.subr.mxu0 0.0
        %667 = vmatpush1.msra.mxu0 0.0
        %668 = vmatprep.subr.mxu0 0.0
        %669 = vmatpush1.msra.mxu0 0.0
        %670 = vmatprep.subr.mxu0 0.0
        %671 = vmatpush1.msra.mxu0 0.0
        %672 = vmatprep.subr.mxu0 0.0
        %673 = vmatpush1.msra.mxu0 0.0
        %674 = vmatprep.subr.mxu0 0.0
        %675 = vmatpush1.msra.mxu0 0.0
        %676 = vmatprep.subr.mxu0 0.0
        %677 = vmatpush1.msra.mxu0 0.0
        %678 = vmatprep.subr.mxu0 0.0
        %679 = vmatpush1.msra.mxu0 0.0
        %680 = vmatprep.subr.mxu0 0.0
        %681 = vmatpush1.msra.mxu0 0.0
        %682 = vmatprep.subr.mxu0 0.0
        %683 = vmatpush1.msra.mxu0 0.0
        %684 = vmatprep.subr.mxu0 0.0
        %685 = vmatpush1.msra.mxu0 0.0
        %686 = vmatprep.subr.mxu0 0.0
        %687 = vmatpush1.msra.mxu0 0.0
        %688 = vmatprep.subr.mxu0 0.0
        %689 = vmatpush1.msra.mxu0 0.0
        %690 = vmatprep.subr.mxu0 0.0
        %691 = vmatpush1.msra.mxu0 0.0
        %692 = vmatprep.subr.mxu0 0.0
        %693 = vmatpush1.msra.mxu0 0.0
        %694 = vmatprep.subr.mxu0 0.0
        %695 = vmatpush1.msra.mxu0 0.0
        %696 = vmatprep.subr.mxu0 0.0
        %697 = vmatpush1.msra.mxu0 0.0
        %698 = vmatprep.subr.mxu0 0.0
        %699 = vmatpush1.msra.mxu0 0.0
        %700 = vmatprep.subr.mxu0 0.0
        %701 = vmatpush1.msra.mxu0 0.0
        %702 = vmatprep.subr.mxu0 0.0
        %703 = vmatpush1.msra.mxu0 0.0
        %704 = vmatprep.subr.mxu0 0.0
        %705 = vmatpush1.msra.mxu0 0.0
        %706 = vmatprep.subr.mxu0 0.0
        %707 = vmatpush1.msra.mxu0 0.0
        %708 = vmatprep.subr.mxu0 0.0
        %709 = vmatpush1.msra.mxu0 0.0
        %710 = vmatprep.subr.mxu0 0.0
        %711 = vmatpush1.msra.mxu0 0.0
        %712 = vmatprep.mubr.f32.mxu0 0.0
        %713 = vmatmul.mubr.f32.gmra.mrb[0].mxu0 %v646
        %v714 = vpop.f32.mrb[0].mxu0
        %v715 = vadd.f32 %v643, %v714
        %v716 = vpop.f32.mrb[0].mxu0
        %717 = vdwg.mxu0
        %v718 = vld [vmem:[%s464] sm:$0xff]
        %s719 = scalar_lea.vmem [#allocation9], 64
        %v720 = vld [vmem:[%s719] sm:$0xff]
        %v721 = vld [vmem:[%s719 + $0x8] sm:$0xff]
        %v722 = vld [vmem:[%s719 + $0x10] sm:$0xff]
        %v723 = vld [vmem:[%s719 + $0x18] sm:$0xff]
        %s724 = scalar_lea.vmem [#allocation11], 2
        %v725 = vld [vmem:[%s724] sm:$0x1]
        %v727 = vlaneseq
        %v728 = vshrl.u32 %v727, 7
        %v729 = vsub.s32 0, %v728
        %v730 = vrot.slane %v725, %v729
        %v733 = vsel %vm556, %v718, 0
        %735 = vmatprep.subr.mxu0 0.0
        %736 = vmatpush1.msra.mxu0 %v720
        %737 = vmatprep.subr.mxu0 0.0
        %738 = vmatpush1.msra.mxu0 %v721
        %739 = vmatprep.subr.mxu0 0.0
        %740 = vmatpush1.msra.mxu0 %v722
        %741 = vmatprep.subr.mxu0 0.0
        %742 = vmatpush1.msra.mxu0 %v723
        %743 = vmatprep.subr.mxu0 0.0
        %744 = vmatpush1.msra.mxu0 0.0
        %745 = vmatprep.subr.mxu0 0.0
        %746 = vmatpush1.msra.mxu0 0.0
        %747 = vmatprep.subr.mxu0 0.0
        %748 = vmatpush1.msra.mxu0 0.0
        %749 = vmatprep.subr.mxu0 0.0
        %750 = vmatpush1.msra.mxu0 0.0
        %751 = vmatprep.subr.mxu0 0.0
        %752 = vmatpush1.msra.mxu0 0.0
        %753 = vmatprep.subr.mxu0 0.0
        %754 = vmatpush1.msra.mxu0 0.0
        %755 = vmatprep.subr.mxu0 0.0
        %756 = vmatpush1.msra.mxu0 0.0
        %757 = vmatprep.subr.mxu0 0.0
        %758 = vmatpush1.msra.mxu0 0.0
        %759 = vmatprep.subr.mxu0 0.0
        %760 = vmatpush1.msra.mxu0 0.0
        %761 = vmatprep.subr.mxu0 0.0
        %762 = vmatpush1.msra.mxu0 0.0
        %763 = vmatprep.subr.mxu0 0.0
        %764 = vmatpush1.msra.mxu0 0.0
        %765 = vmatprep.subr.mxu0 0.0
        %766 = vmatpush1.msra.mxu0 0.0
        %767 = vmatprep.subr.mxu0 0.0
        %768 = vmatpush1.msra.mxu0 0.0
        %769 = vmatprep.subr.mxu0 0.0
        %770 = vmatpush1.msra.mxu0 0.0
        %771 = vmatprep.subr.mxu0 0.0
        %772 = vmatpush1.msra.mxu0 0.0
        %773 = vmatprep.subr.mxu0 0.0
        %774 = vmatpush1.msra.mxu0 0.0
        %775 = vmatprep.subr.mxu0 0.0
        %776 = vmatpush1.msra.mxu0 0.0
        %777 = vmatprep.subr.mxu0 0.0
        %778 = vmatpush1.msra.mxu0 0.0
        %779 = vmatprep.subr.mxu0 0.0
        %780 = vmatpush1.msra.mxu0 0.0
        %781 = vmatprep.subr.mxu0 0.0
        %782 = vmatpush1.msra.mxu0 0.0
        %783 = vmatprep.subr.mxu0 0.0
        %784 = vmatpush1.msra.mxu0 0.0
        %785 = vmatprep.subr.mxu0 0.0
        %786 = vmatpush1.msra.mxu0 0.0
        %787 = vmatprep.subr.mxu0 0.0
        %788 = vmatpush1.msra.mxu0 0.0
        %789 = vmatprep.subr.mxu0 0.0
        %790 = vmatpush1.msra.mxu0 0.0
        %791 = vmatprep.subr.mxu0 0.0
        %792 = vmatpush1.msra.mxu0 0.0
        %793 = vmatprep.subr.mxu0 0.0
        %794 = vmatpush1.msra.mxu0 0.0
        %795 = vmatprep.subr.mxu0 0.0
        %796 = vmatpush1.msra.mxu0 0.0
        %797 = vmatprep.subr.mxu0 0.0
        %798 = vmatpush1.msra.mxu0 0.0
        %799 = vmatprep.mubr.f32.mxu0 0.0
        %800 = vmatmul.mubr.f32.gmra.mrb[0].mxu0 %v733
        %v801 = vpop.f32.mrb[0].mxu0
        %v802 = vadd.f32 %v730, %v801
        %v803 = vpop.f32.mrb[0].mxu0
        %804 = vdwg.mxu0
        %v805 = vld [vmem:[%s543] sm:$0xff]
        %s806 = sld [smem:[#allocation12]]
        %v807 = vstv %s806
        %v808 = vmul.f32 %v805, %v807
        %s809 = sld [smem:[#allocation13]]
        %v810 = vstv %s809
        %v811 = vadd.f32 %v808, %v810
        %v812 = vmax.f32 %v811, 0.0
        %s813 = sld [smem:[#allocation12 + $0x1]]
        %v814 = vstv %s813
        %v815 = vmul.f32 %v805, %v814
        %s816 = sld [smem:[#allocation13 + $0x1]]
        %v817 = vstv %s816
        %v818 = vadd.f32 %v815, %v817
        %v819 = vmax.f32 %v818, 0.0
        %s820 = sld [smem:[#allocation12 + $0x2]]
        %v821 = vstv %s820
        %v822 = vmul.f32 %v805, %v821
        %s823 = sld [smem:[#allocation13 + $0x2]]
        %v824 = vstv %s823
        %v825 = vadd.f32 %v822, %v824
        %v826 = vmax.f32 %v825, 0.0
        %s827 = sld [smem:[#allocation12 + $0x3]]
        %v828 = vstv %s827
        %v829 = vmul.f32 %v805, %v828
        %s830 = sld [smem:[#allocation13 + $0x3]]
        %v831 = vstv %s830
        %v832 = vadd.f32 %v829, %v831
        %v833 = vmax.f32 %v832, 0.0
        %s834 = sld [smem:[#allocation12 + $0x4]]
        %v835 = vstv %s834
        %v836 = vmul.f32 %v805, %v835
        %s837 = sld [smem:[#allocation13 + $0x4]]
        %v838 = vstv %s837
        %v839 = vadd.f32 %v836, %v838
        %v840 = vmax.f32 %v839, 0.0
        %s841 = sld [smem:[#allocation12 + $0x5]]
        %v842 = vstv %s841
        %v843 = vmul.f32 %v805, %v842
        %s844 = sld [smem:[#allocation13 + $0x5]]
        %v845 = vstv %s844
        %v846 = vadd.f32 %v843, %v845
        %v847 = vmax.f32 %v846, 0.0
        %s848 = sld [smem:[#allocation12 + $0x6]]
        %v849 = vstv %s848
        %v850 = vmul.f32 %v805, %v849
        %s851 = sld [smem:[#allocation13 + $0x6]]
        %v852 = vstv %s851
        %v853 = vadd.f32 %v850, %v852
        %v854 = vmax.f32 %v853, 0.0
        %s855 = sld [smem:[#allocation12 + $0x7]]
        %v856 = vstv %s855
        %v857 = vmul.f32 %v805, %v856
        %s858 = sld [smem:[#allocation13 + $0x7]]
        %v859 = vstv %s858
        %v860 = vadd.f32 %v857, %v859
        %v861 = vmax.f32 %v860, 0.0
        %s862 = sld [smem:[#allocation15]]
        %v863 = vstv %s862
        %v864 = vmul.f32 %v812, %v863
        %s865 = sld [smem:[#allocation15 + $0x1]]
        %v866 = vstv %s865
        %v867 = vmul.f32 %v819, %v866
        %v868 = vadd.f32 %v864, %v867
        %s869 = sld [smem:[#allocation15 + $0x2]]
        %v870 = vstv %s869
        %v871 = vmul.f32 %v826, %v870
        %v872 = vadd.f32 %v868, %v871
        %s873 = sld [smem:[#allocation15 + $0x3]]
        %v874 = vstv %s873
        %v875 = vmul.f32 %v833, %v874
        %v876 = vadd.f32 %v872, %v875
        %s877 = sld [smem:[#allocation15 + $0x4]]
        %v878 = vstv %s877
        %v879 = vmul.f32 %v840, %v878
        %v880 = vadd.f32 %v876, %v879
        %s881 = sld [smem:[#allocation15 + $0x5]]
        %v882 = vstv %s881
        %v883 = vmul.f32 %v847, %v882
        %v884 = vadd.f32 %v880, %v883
        %s885 = sld [smem:[#allocation15 + $0x6]]
        %v886 = vstv %s885
        %v887 = vmul.f32 %v854, %v886
        %v888 = vadd.f32 %v884, %v887
        %s889 = sld [smem:[#allocation15 + $0x7]]
        %v890 = vstv %s889
        %v891 = vmul.f32 %v861, %v890
        %v892 = vadd.f32 %v888, %v891
        %vm893 = vcmask 64512
        %v895 = vsel %vm893, %v630, 0
        %v898 = vsel %vm893, %v715, 0
        %900 = vmatprep.subr.mxu0 0.0
        %901 = vmatpush1.xpose.msra.mxu0 %v898
        %902 = vmatprep.subr.mxu0 0.0
        %903 = vmatpush1.xpose.msra.mxu0 0.0
        %904 = vmatprep.subr.mxu0 0.0
        %905 = vmatpush1.xpose.msra.mxu0 0.0
        %906 = vmatprep.subr.mxu0 0.0
        %907 = vmatpush1.xpose.msra.mxu0 0.0
        %908 = vmatprep.subr.mxu0 0.0
        %909 = vmatpush1.xpose.msra.mxu0 0.0
        %910 = vmatprep.subr.mxu0 0.0
        %911 = vmatpush1.xpose.msra.mxu0 0.0
        %912 = vmatprep.subr.mxu0 0.0
        %913 = vmatpush1.xpose.msra.mxu0 0.0
        %914 = vmatprep.subr.mxu0 0.0
        %915 = vmatpush1.xpose.msra.mxu0 0.0
        %916 = vmatprep.subr.mxu0 0.0
        %917 = vmatpush1.xpose.msra.mxu0 0.0
        %918 = vmatprep.subr.mxu0 0.0
        %919 = vmatpush1.xpose.msra.mxu0 0.0
        %920 = vmatprep.subr.mxu0 0.0
        %921 = vmatpush1.xpose.msra.mxu0 0.0
        %922 = vmatprep.subr.mxu0 0.0
        %923 = vmatpush1.xpose.msra.mxu0 0.0
        %924 = vmatprep.subr.mxu0 0.0
        %925 = vmatpush1.xpose.msra.mxu0 0.0
        %926 = vmatprep.subr.mxu0 0.0
        %927 = vmatpush1.xpose.msra.mxu0 0.0
        %928 = vmatprep.subr.mxu0 0.0
        %929 = vmatpush1.xpose.msra.mxu0 0.0
        %930 = vmatprep.subr.mxu0 0.0
        %931 = vmatpush1.xpose.msra.mxu0 0.0
        %932 = vmatprep.subr.mxu0 0.0
        %933 = vmatpush1.xpose.msra.mxu0 0.0
        %934 = vmatprep.subr.mxu0 0.0
        %935 = vmatpush1.xpose.msra.mxu0 0.0
        %936 = vmatprep.subr.mxu0 0.0
        %937 = vmatpush1.xpose.msra.mxu0 0.0
        %938 = vmatprep.subr.mxu0 0.0
        %939 = vmatpush1.xpose.msra.mxu0 0.0
        %940 = vmatprep.subr.mxu0 0.0
        %941 = vmatpush1.xpose.msra.mxu0 0.0
        %942 = vmatprep.subr.mxu0 0.0
        %943 = vmatpush1.xpose.msra.mxu0 0.0
        %944 = vmatprep.subr.mxu0 0.0
        %945 = vmatpush1.xpose.msra.mxu0 0.0
        %946 = vmatprep.subr.mxu0 0.0
        %947 = vmatpush1.xpose.msra.mxu0 0.0
        %948 = vmatprep.subr.mxu0 0.0
        %949 = vmatpush1.xpose.msra.mxu0 0.0
        %950 = vmatprep.subr.mxu0 0.0
        %951 = vmatpush1.xpose.msra.mxu0 0.0
        %952 = vmatprep.subr.mxu0 0.0
        %953 = vmatpush1.xpose.msra.mxu0 0.0
        %954 = vmatprep.subr.mxu0 0.0
        %955 = vmatpush1.xpose.msra.mxu0 0.0
        %956 = vmatprep.subr.mxu0 0.0
        %957 = vmatpush1.xpose.msra.mxu0 0.0
        %958 = vmatprep.subr.mxu0 0.0
        %959 = vmatpush1.xpose.msra.mxu0 0.0
        %960 = vmatprep.subr.mxu0 0.0
        %961 = vmatpush1.xpose.msra.mxu0 0.0
        %962 = vmatprep.subr.mxu0 0.0
        %963 = vmatpush1.xpose.msra.mxu0 0.0
        %964 = vmatprep.mubr.f32.mxu0 0.0
        %965 = vmatmul.mubr.f32.gmra.mrb[0].mxu0 %v895
        %v966 = vpop.f32.mrb[0].mxu0
        %v967 = vadd.f32 %v892, %v966
        %v968 = vpop.f32.mrb[0].mxu0
        %969 = vdwg.mxu0
        %s970 = sld [smem:[#allocation16]]
        %v971 = vstv %s970
        %v972 = vadd.f32 %v967, %v971
        %v973 = vsel %vm893, %v972, -inf
        %974 = vmax.xlane.f32.xlu0 %v973
        %v975 = vpop.xlane.xlu0 %974
        %v976 = vsub.f32 %v972, %v975
        %v977 = vmul.f32 %v976, 1.442695
        %v978 = vpow.pop %v977
        %v979 = vsel %vm893, %v978, 0.0
        %980 = vadd.xlane.f32.xlu0 %v979
        %v981 = vpop.xlane.xlu0 %980
        %v982 = vrcp.pop %v981
        %v983 = vmul.f32 %v978, %v982
        %v985 = vsel %vm893, %v983, 0
        %987 = vmatprep.subr.mxu0 0.0
        %988 = vmatpush1.msra.mxu0 %v802
        %989 = vmatprep.subr.mxu0 0.0
        %990 = vmatpush1.msra.mxu0 0.0
        %991 = vmatprep.subr.mxu0 0.0
        %992 = vmatpush1.msra.mxu0 0.0
        %993 = vmatprep.subr.mxu0 0.0
        %994 = vmatpush1.msra.mxu0 0.0
        %995 = vmatprep.subr.mxu0 0.0
        %996 = vmatpush1.msra.mxu0 0.0
        %997 = vmatprep.subr.mxu0 0.0
        %998 = vmatpush1.msra.mxu0 0.0
        %999 = vmatprep.subr.mxu0 0.0
        %1000 = vmatpush1.msra.mxu0 0.0
        %1001 = vmatprep.subr.mxu0 0.0
        %1002 = vmatpush1.msra.mxu0 0.0
        %1003 = vmatprep.subr.mxu0 0.0
        %1004 = vmatpush1.msra.mxu0 0.0
        %1005 = vmatprep.subr.mxu0 0.0
        %1006 = vmatpush1.msra.mxu0 0.0
        %1007 = vmatprep.subr.mxu0 0.0
        %1008 = vmatpush1.msra.mxu0 0.0
        %1009 = vmatprep.subr.mxu0 0.0
        %1010 = vmatpush1.msra.mxu0 0.0
        %1011 = vmatprep.subr.mxu0 0.0
        %1012 = vmatpush1.msra.mxu0 0.0
        %1013 = vmatprep.subr.mxu0 0.0
        %1014 = vmatpush1.msra.mxu0 0.0
        %1015 = vmatprep.subr.mxu0 0.0
        %1016 = vmatpush1.msra.mxu0 0.0
        %1017 = vmatprep.subr.mxu0 0.0
        %1018 = vmatpush1.msra.mxu0 0.0
        %1019 = vmatprep.subr.mxu0 0.0
        %1020 = vmatpush1.msra.mxu0 0.0
        %1021 = vmatprep.subr.mxu0 0.0
        %1022 = vmatpush1.msra.mxu0 0.0
        %1023 = vmatprep.subr.mxu0 0.0
        %1024 = vmatpush1.msra.mxu0 0.0
        %1025 = vmatprep.subr.mxu0 0.0
        %1026 = vmatpush1.msra.mxu0 0.0
        %1027 = vmatprep.subr.mxu0 0.0
        %1028 = vmatpush1.msra.mxu0 0.0
        %1029 = vmatprep.subr.mxu0 0.0
        %1030 = vmatpush1.msra.mxu0 0.0
        %1031 = vmatprep.subr.mxu0 0.0
        %1032 = vmatpush1.msra.mxu0 0.0
        %1033 = vmatprep.subr.mxu0 0.0
        %1034 = vmatpush1.msra.mxu0 0.0
        %1035 = vmatprep.subr.mxu0 0.0
        %1036 = vmatpush1.msra.mxu0 0.0
        %1037 = vmatprep.subr.mxu0 0.0
        %1038 = vmatpush1.msra.mxu0 0.0
        %1039 = vmatprep.subr.mxu0 0.0
        %1040 = vmatpush1.msra.mxu0 0.0
        %1041 = vmatprep.subr.mxu0 0.0
        %1042 = vmatpush1.msra.mxu0 0.0
        %1043 = vmatprep.subr.mxu0 0.0
        %1044 = vmatpush1.msra.mxu0 0.0
        %1045 = vmatprep.subr.mxu0 0.0
        %1046 = vmatpush1.msra.mxu0 0.0
        %1047 = vmatprep.subr.mxu0 0.0
        %1048 = vmatpush1.msra.mxu0 0.0
        %1049 = vmatprep.subr.mxu0 0.0
        %1050 = vmatpush1.msra.mxu0 0.0
        %1051 = vmatprep.mubr.f32.mxu0 0.0
        %1052 = vmatmul.mubr.f32.gmra.mrb[0].mxu0 %v985
        %v1053 = vpop.f32.mrb[0].mxu0
        %v1054 = vadd.f32 0.0, %v1053
        %v1055 = vpop.f32.mrb[0].mxu0
        %1056 = vdwg.mxu0
        %s1057 = sld [smem:[#allocation15 + $0x80]]
        %v1058 = vstv %s1057
        %v1059 = vmul.f32 %v812, %v1058
        %s1060 = sld [smem:[#allocation15 + $0x81]]
        %v1061 = vstv %s1060
        %v1062 = vmul.f32 %v819, %v1061
        %v1063 = vadd.f32 %v1059, %v1062
        %s1064 = sld [smem:[#allocation15 + $0x82]]
        %v1065 = vstv %s1064
        %v1066 = vmul.f32 %v826, %v1065
        %v1067 = vadd.f32 %v1063, %v1066
        %s1068 = sld [smem:[#allocation15 + $0x83]]
        %v1069 = vstv %s1068
        %v1070 = vmul.f32 %v833, %v1069
        %v1071 = vadd.f32 %v1067, %v1070
        %s1072 = sld [smem:[#allocation15 + $0x84]]
        %v1073 = vstv %s1072
        %v1074 = vmul.f32 %v840, %v1073
        %v1075 = vadd.f32 %v1071, %v1074
        %s1076 = sld [smem:[#allocation15 + $0x85]]
        %v1077 = vstv %s1076
        %v1078 = vmul.f32 %v847, %v1077
        %v1079 = vadd.f32 %v1075, %v1078
        %s1080 = sld [smem:[#allocation15 + $0x86]]
        %v1081 = vstv %s1080
        %v1082 = vmul.f32 %v854, %v1081
        %v1083 = vadd.f32 %v1079, %v1082
        %s1084 = sld [smem:[#allocation15 + $0x87]]
        %v1085 = vstv %s1084
        %v1086 = vmul.f32 %v861, %v1085
        %v1087 = vadd.f32 %v1083, %v1086
        %1088 = vrot.lane.b32.xlu0 %v630, 120
        %v1089 = vpop.permute.xlu0 %1088
        %1090 = vrot.lane.b32.xlu0 %v715, 120
        %v1091 = vpop.permute.xlu0 %1090
        %v1092 = vsel %vm893, %v1089, 0
        %v1094 = vsel %vm893, %v1091, 0
        %1096 = vmatprep.subr.mxu0 0.0
        %1097 = vmatpush1.xpose.msra.mxu0 %v1094
        %1098 = vmatprep.subr.mxu0 0.0
        %1099 = vmatpush1.xpose.msra.mxu0 0.0
        %1100 = vmatprep.subr.mxu0 0.0
        %1101 = vmatpush1.xpose.msra.mxu0 0.0
        %1102 = vmatprep.subr.mxu0 0.0
        %1103 = vmatpush1.xpose.msra.mxu0 0.0
        %1104 = vmatprep.subr.mxu0 0.0
        %1105 = vmatpush1.xpose.msra.mxu0 0.0
        %1106 = vmatprep.subr.mxu0 0.0
        %1107 = vmatpush1.xpose.msra.mxu0 0.0
        %1108 = vmatprep.subr.mxu0 0.0
        %1109 = vmatpush1.xpose.msra.mxu0 0.0
        %1110 = vmatprep.subr.mxu0 0.0
        %1111 = vmatpush1.xpose.msra.mxu0 0.0
        %1112 = vmatprep.subr.mxu0 0.0
        %1113 = vmatpush1.xpose.msra.mxu0 0.0
        %1114 = vmatprep.subr.mxu0 0.0
        %1115 = vmatpush1.xpose.msra.mxu0 0.0
        %1116 = vmatprep.subr.mxu0 0.0
        %1117 = vmatpush1.xpose.msra.mxu0 0.0
        %1118 = vmatprep.subr.mxu0 0.0
        %1119 = vmatpush1.xpose.msra.mxu0 0.0
        %1120 = vmatprep.subr.mxu0 0.0
        %1121 = vmatpush1.xpose.msra.mxu0 0.0
        %1122 = vmatprep.subr.mxu0 0.0
        %1123 = vmatpush1.xpose.msra.mxu0 0.0
        %1124 = vmatprep.subr.mxu0 0.0
        %1125 = vmatpush1.xpose.msra.mxu0 0.0
        %1126 = vmatprep.subr.mxu0 0.0
        %1127 = vmatpush1.xpose.msra.mxu0 0.0
        %1128 = vmatprep.subr.mxu0 0.0
        %1129 = vmatpush1.xpose.msra.mxu0 0.0
        %1130 = vmatprep.subr.mxu0 0.0
        %1131 = vmatpush1.xpose.msra.mxu0 0.0
        %1132 = vmatprep.subr.mxu0 0.0
        %1133 = vmatpush1.xpose.msra.mxu0 0.0
        %1134 = vmatprep.subr.mxu0 0.0
        %1135 = vmatpush1.xpose.msra.mxu0 0.0
        %1136 = vmatprep.subr.mxu0 0.0
        %1137 = vmatpush1.xpose.msra.mxu0 0.0
        %1138 = vmatprep.subr.mxu0 0.0
        %1139 = vmatpush1.xpose.msra.mxu0 0.0
        %1140 = vmatprep.subr.mxu0 0.0
        %1141 = vmatpush1.xpose.msra.mxu0 0.0
        %1142 = vmatprep.subr.mxu0 0.0
        %1143 = vmatpush1.xpose.msra.mxu0 0.0
        %1144 = vmatprep.subr.mxu0 0.0
        %1145 = vmatpush1.xpose.msra.mxu0 0.0
        %1146 = vmatprep.subr.mxu0 0.0
        %1147 = vmatpush1.xpose.msra.mxu0 0.0
        %1148 = vmatprep.subr.mxu0 0.0
        %1149 = vmatpush1.xpose.msra.mxu0 0.0
        %1150 = vmatprep.subr.mxu0 0.0
        %1151 = vmatpush1.xpose.msra.mxu0 0.0
        %1152 = vmatprep.subr.mxu0 0.0
        %1153 = vmatpush1.xpose.msra.mxu0 0.0
        %1154 = vmatprep.subr.mxu0 0.0
        %1155 = vmatpush1.xpose.msra.mxu0 0.0
        %1156 = vmatprep.subr.mxu0 0.0
        %1157 = vmatpush1.xpose.msra.mxu0 0.0
        %1158 = vmatprep.subr.mxu0 0.0
        %1159 = vmatpush1.xpose.msra.mxu0 0.0
        %1160 = vmatprep.mubr.f32.mxu0 0.0
        %1161 = vmatmul.mubr.f32.gmra.mrb[0].mxu0 %v1092
        %v1162 = vpop.f32.mrb[0].mxu0
        %v1163 = vadd.f32 %v1087, %v1162
        %v1164 = vpop.f32.mrb[0].mxu0
        %1165 = vdwg.mxu0
        %s1166 = sld [smem:[#allocation16 + $0x1]]
        %v1167 = vstv %s1166
        %v1168 = vadd.f32 %v1163, %v1167
        %v1169 = vsel %vm893, %v1168, -inf
        %1170 = vmax.xlane.f32.xlu0 %v1169
        %v1171 = vpop.xlane.xlu0 %1170
        %v1172 = vsub.f32 %v1168, %v1171
        %v1173 = vmul.f32 %v1172, 1.442695
        %v1174 = vpow.pop %v1173
        %v1175 = vsel %vm893, %v1174, 0.0
        %1176 = vadd.xlane.f32.xlu0 %v1175
        %v1177 = vpop.xlane.xlu0 %1176
        %v1178 = vrcp.pop %v1177
        %v1179 = vmul.f32 %v1174, %v1178
        %1181 = vrot.lane.b32.xlu0 %v802, 120
        %v1182 = vpop.permute.xlu0 %1181
        %v1185 = vsel %vm893, %v1179, 0
        %1187 = vmatprep.subr.mxu0 0.0
        %1188 = vmatpush1.msra.mxu0 %v1182
        %1189 = vmatprep.subr.mxu0 0.0
        %1190 = vmatpush1.msra.mxu0 0.0
        %1191 = vmatprep.subr.mxu0 0.0
        %1192 = vmatpush1.msra.mxu0 0.0
        %1193 = vmatprep.subr.mxu0 0.0
        %1194 = vmatpush1.msra.mxu0 0.0
        %1195 = vmatprep.subr.mxu0 0.0
        %1196 = vmatpush1.msra.mxu0 0.0
        %1197 = vmatprep.subr.mxu0 0.0
        %1198 = vmatpush1.msra.mxu0 0.0
        %1199 = vmatprep.subr.mxu0 0.0
        %1200 = vmatpush1.msra.mxu0 0.0
        %1201 = vmatprep.subr.mxu0 0.0
        %1202 = vmatpush1.msra.mxu0 0.0
        %1203 = vmatprep.subr.mxu0 0.0
        %1204 = vmatpush1.msra.mxu0 0.0
        %1205 = vmatprep.subr.mxu0 0.0
        %1206 = vmatpush1.msra.mxu0 0.0
        %1207 = vmatprep.subr.mxu0 0.0
        %1208 = vmatpush1.msra.mxu0 0.0
        %1209 = vmatprep.subr.mxu0 0.0
        %1210 = vmatpush1.msra.mxu0 0.0
        %1211 = vmatprep.subr.mxu0 0.0
        %1212 = vmatpush1.msra.mxu0 0.0
        %1213 = vmatprep.subr.mxu0 0.0
        %1214 = vmatpush1.msra.mxu0 0.0
        %1215 = vmatprep.subr.mxu0 0.0
        %1216 = vmatpush1.msra.mxu0 0.0
        %1217 = vmatprep.subr.mxu0 0.0
        %1218 = vmatpush1.msra.mxu0 0.0
        %1219 = vmatprep.subr.mxu0 0.0
        %1220 = vmatpush1.msra.mxu0 0.0
        %1221 = vmatprep.subr.mxu0 0.0
        %1222 = vmatpush1.msra.mxu0 0.0
        %1223 = vmatprep.subr.mxu0 0.0
        %1224 = vmatpush1.msra.mxu0 0.0
        %1225 = vmatprep.subr.mxu0 0.0
        %1226 = vmatpush1.msra.mxu0 0.0
        %1227 = vmatprep.subr.mxu0 0.0
        %1228 = vmatpush1.msra.mxu0 0.0
        %1229 = vmatprep.subr.mxu0 0.0
        %1230 = vmatpush1.msra.mxu0 0.0
        %1231 = vmatprep.subr.mxu0 0.0
        %1232 = vmatpush1.msra.mxu0 0.0
        %1233 = vmatprep.subr.mxu0 0.0
        %1234 = vmatpush1.msra.mxu0 0.0
        %1235 = vmatprep.subr.mxu0 0.0
        %1236 = vmatpush1.msra.mxu0 0.0
        %1237 = vmatprep.subr.mxu0 0.0
        %1238 = vmatpush1.msra.mxu0 0.0
        %1239 = vmatprep.subr.mxu0 0.0
        %1240 = vmatpush1.msra.mxu0 0.0
        %1241 = vmatprep.subr.mxu0 0.0
        %1242 = vmatpush1.msra.mxu0 0.0
        %1243 = vmatprep.subr.mxu0 0.0
        %1244 = vmatpush1.msra.mxu0 0.0
        %1245 = vmatprep.subr.mxu0 0.0
        %1246 = vmatpush1.msra.mxu0 0.0
        %1247 = vmatprep.subr.mxu0 0.0
        %1248 = vmatpush1.msra.mxu0 0.0
        %1249 = vmatprep.subr.mxu0 0.0
        %1250 = vmatpush1.msra.mxu0 0.0
        %1251 = vmatprep.mubr.f32.mxu0 0.0
        %1252 = vmatmul.mubr.f32.gmra.mrb[0].mxu0 %v1185
        %v1253 = vpop.f32.mrb[0].mxu0
        %v1254 = vadd.f32 0.0, %v1253
        %v1255 = vpop.f32.mrb[0].mxu0
        %1256 = vdwg.mxu0
        %s1257 = sld [smem:[#allocation15 + $0x100]]
        %v1258 = vstv %s1257
        %v1259 = vmul.f32 %v812, %v1258
        %s1260 = sld [smem:[#allocation15 + $0x101]]
        %v1261 = vstv %s1260
        %v1262 = vmul.f32 %v819, %v1261
        %v1263 = vadd.f32 %v1259, %v1262
        %s1264 = sld [smem:[#allocation15 + $0x102]]
        %v1265 = vstv %s1264
        %v1266 = vmul.f32 %v826, %v1265
        %v1267 = vadd.f32 %v1263, %v1266
        %s1268 = sld [smem:[#allocation15 + $0x103]]
        %v1269 = vstv %s1268
        %v1270 = vmul.f32 %v833, %v1269
        %v1271 = vadd.f32 %v1267, %v1270
        %s1272 = sld [smem:[#allocation15 + $0x104]]
        %v1273 = vstv %s1272
        %v1274 = vmul.f32 %v840, %v1273
        %v1275 = vadd.f32 %v1271, %v1274
        %s1276 = sld [smem:[#allocation15 + $0x105]]
        %v1277 = vstv %s1276
        %v1278 = vmul.f32 %v847, %v1277
        %v1279 = vadd.f32 %v1275, %v1278
        %s1280 = sld [smem:[#allocation15 + $0x106]]
        %v1281 = vstv %s1280
        %v1282 = vmul.f32 %v854, %v1281
        %v1283 = vadd.f32 %v1279, %v1282
        %s1284 = sld [smem:[#allocation15 + $0x107]]
        %v1285 = vstv %s1284
        %v1286 = vmul.f32 %v861, %v1285
        %v1287 = vadd.f32 %v1283, %v1286
        %1288 = vrot.lane.b32.xlu0 %v630, 112
        %v1289 = vpop.permute.xlu0 %1288
        %1290 = vrot.lane.b32.xlu0 %v715, 112
        %v1291 = vpop.permute.xlu0 %1290
        %v1292 = vsel %vm893, %v1289, 0
        %v1294 = vsel %vm893, %v1291, 0
        %1296 = vmatprep.subr.mxu0 0.0
        %1297 = vmatpush1.xpose.msra.mxu0 %v1294
        %1298 = vmatprep.subr.mxu0 0.0
        %1299 = vmatpush1.xpose.msra.mxu0 0.0
        %1300 = vmatprep.subr.mxu0 0.0
        %1301 = vmatpush1.xpose.msra.mxu0 0.0
        %1302 = vmatprep.subr.mxu0 0.0
        %1303 = vmatpush1.xpose.msra.mxu0 0.0
        %1304 = vmatprep.subr.mxu0 0.0
        %1305 = vmatpush1.xpose.msra.mxu0 0.0
        %1306 = vmatprep.subr.mxu0 0.0
        %1307 = vmatpush1.xpose.msra.mxu0 0.0
        %1308 = vmatprep.subr.mxu0 0.0
        %1309 = vmatpush1.xpose.msra.mxu0 0.0
        %1310 = vmatprep.subr.mxu0 0.0
        %1311 = vmatpush1.xpose.msra.mxu0 0.0
        %1312 = vmatprep.subr.mxu0 0.0
        %1313 = vmatpush1.xpose.msra.mxu0 0.0
        %1314 = vmatprep.subr.mxu0 0.0
        %1315 = vmatpush1.xpose.msra.mxu0 0.0
        %1316 = vmatprep.subr.mxu0 0.0
        %1317 = vmatpush1.xpose.msra.mxu0 0.0
        %1318 = vmatprep.subr.mxu0 0.0
        %1319 = vmatpush1.xpose.msra.mxu0 0.0
        %1320 = vmatprep.subr.mxu0 0.0
        %1321 = vmatpush1.xpose.msra.mxu0 0.0
        %1322 = vmatprep.subr.mxu0 0.0
        %1323 = vmatpush1.xpose.msra.mxu0 0.0
        %1324 = vmatprep.subr.mxu0 0.0
        %1325 = vmatpush1.xpose.msra.mxu0 0.0
        %1326 = vmatprep.subr.mxu0 0.0
        %1327 = vmatpush1.xpose.msra.mxu0 0.0
        %1328 = vmatprep.subr.mxu0 0.0
        %1329 = vmatpush1.xpose.msra.mxu0 0.0
        %1330 = vmatprep.subr.mxu0 0.0
        %1331 = vmatpush1.xpose.msra.mxu0 0.0
        %1332 = vmatprep.subr.mxu0 0.0
        %1333 = vmatpush1.xpose.msra.mxu0 0.0
        %1334 = vmatprep.subr.mxu0 0.0
        %1335 = vmatpush1.xpose.msra.mxu0 0.0
        %1336 = vmatprep.subr.mxu0 0.0
        %1337 = vmatpush1.xpose.msra.mxu0 0.0
        %1338 = vmatprep.subr.mxu0 0.0
        %1339 = vmatpush1.xpose.msra.mxu0 0.0
        %1340 = vmatprep.subr.mxu0 0.0
        %1341 = vmatpush1.xpose.msra.mxu0 0.0
        %1342 = vmatprep.subr.mxu0 0.0
        %1343 = vmatpush1.xpose.msra.mxu0 0.0
        %1344 = vmatprep.subr.mxu0 0.0
        %1345 = vmatpush1.xpose.msra.mxu0 0.0
        %1346 = vmatprep.subr.mxu0 0.0
        %1347 = vmatpush1.xpose.msra.mxu0 0.0
        %1348 = vmatprep.subr.mxu0 0.0
        %1349 = vmatpush1.xpose.msra.mxu0 0.0
        %1350 = vmatprep.subr.mxu0 0.0
        %1351 = vmatpush1.xpose.msra.mxu0 0.0
        %1352 = vmatprep.subr.mxu0 0.0
        %1353 = vmatpush1.xpose.msra.mxu0 0.0
        %1354 = vmatprep.subr.mxu0 0.0
        %1355 = vmatpush1.xpose.msra.mxu0 0.0
        %1356 = vmatprep.subr.mxu0 0.0
        %1357 = vmatpush1.xpose.msra.mxu0 0.0
        %1358 = vmatprep.subr.mxu0 0.0
        %1359 = vmatpush1.xpose.msra.mxu0 0.0
        %1360 = vmatprep.mubr.f32.mxu0 0.0
        %1361 = vmatmul.mubr.f32.gmra.mrb[0].mxu0 %v1292
        %v1362 = vpop.f32.mrb[0].mxu0
        %v1363 = vadd.f32 %v1287, %v1362
        %v1364 = vpop.f32.mrb[0].mxu0
        %1365 = vdwg.mxu0
        %s1366 = sld [smem:[#allocation16 + $0x2]]
        %v1367 = vstv %s1366
        %v1368 = vadd.f32 %v1363, %v1367
        %v1369 = vsel %vm893, %v1368, -inf
        %1370 = vmax.xlane.f32.xlu0 %v1369
        %v1371 = vpop.xlane.xlu0 %1370
        %v1372 = vsub.f32 %v1368, %v1371
        %v1373 = vmul.f32 %v1372, 1.442695
        %v1374 = vpow.pop %v1373
        %v1375 = vsel %vm893, %v1374, 0.0
        %1376 = vadd.xlane.f32.xlu0 %v1375
        %v1377 = vpop.xlane.xlu0 %1376
        %v1378 = vrcp.pop %v1377
        %v1379 = vmul.f32 %v1374, %v1378
        %1380 = vrot.lane.b32.xlu0 %v802, 112
        %v1381 = vpop.permute.xlu0 %1380
        %v1384 = vsel %vm893, %v1379, 0
        %1386 = vmatprep.subr.mxu0 0.0
        %1387 = vmatpush1.msra.mxu0 %v1381
        %1388 = vmatprep.subr.mxu0 0.0
        %1389 = vmatpush1.msra.mxu0 0.0
        %1390 = vmatprep.subr.mxu0 0.0
        %1391 = vmatpush1.msra.mxu0 0.0
        %1392 = vmatprep.subr.mxu0 0.0
        %1393 = vmatpush1.msra.mxu0 0.0
        %1394 = vmatprep.subr.mxu0 0.0
        %1395 = vmatpush1.msra.mxu0 0.0
        %1396 = vmatprep.subr.mxu0 0.0
        %1397 = vmatpush1.msra.mxu0 0.0
        %1398 = vmatprep.subr.mxu0 0.0
        %1399 = vmatpush1.msra.mxu0 0.0
        %1400 = vmatprep.subr.mxu0 0.0
        %1401 = vmatpush1.msra.mxu0 0.0
        %1402 = vmatprep.subr.mxu0 0.0
        %1403 = vmatpush1.msra.mxu0 0.0
        %1404 = vmatprep.subr.mxu0 0.0
        %1405 = vmatpush1.msra.mxu0 0.0
        %1406 = vmatprep.subr.mxu0 0.0
        %1407 = vmatpush1.msra.mxu0 0.0
        %1408 = vmatprep.subr.mxu0 0.0
        %1409 = vmatpush1.msra.mxu0 0.0
        %1410 = vmatprep.subr.mxu0 0.0
        %1411 = vmatpush1.msra.mxu0 0.0
        %1412 = vmatprep.subr.mxu0 0.0
        %1413 = vmatpush1.msra.mxu0 0.0
        %1414 = vmatprep.subr.mxu0 0.0
        %1415 = vmatpush1.msra.mxu0 0.0
        %1416 = vmatprep.subr.mxu0 0.0
        %1417 = vmatpush1.msra.mxu0 0.0
        %1418 = vmatprep.subr.mxu0 0.0
        %1419 = vmatpush1.msra.mxu0 0.0
        %1420 = vmatprep.subr.mxu0 0.0
        %1421 = vmatpush1.msra.mxu0 0.0
        %1422 = vmatprep.subr.mxu0 0.0
        %1423 = vmatpush1.msra.mxu0 0.0
        %1424 = vmatprep.subr.mxu0 0.0
        %1425 = vmatpush1.msra.mxu0 0.0
        %1426 = vmatprep.subr.mxu0 0.0
        %1427 = vmatpush1.msra.mxu0 0.0
        %1428 = vmatprep.subr.mxu0 0.0
        %1429 = vmatpush1.msra.mxu0 0.0
        %1430 = vmatprep.subr.mxu0 0.0
        %1431 = vmatpush1.msra.mxu0 0.0
        %1432 = vmatprep.subr.mxu0 0.0
        %1433 = vmatpush1.msra.mxu0 0.0
        %1434 = vmatprep.subr.mxu0 0.0
        %1435 = vmatpush1.msra.mxu0 0.0
        %1436 = vmatprep.subr.mxu0 0.0
        %1437 = vmatpush1.msra.mxu0 0.0
        %1438 = vmatprep.subr.mxu0 0.0
        %1439 = vmatpush1.msra.mxu0 0.0
        %1440 = vmatprep.subr.mxu0 0.0
        %1441 = vmatpush1.msra.mxu0 0.0
        %1442 = vmatprep.subr.mxu0 0.0
        %1443 = vmatpush1.msra.mxu0 0.0
        %1444 = vmatprep.subr.mxu0 0.0
        %1445 = vmatpush1.msra.mxu0 0.0
        %1446 = vmatprep.subr.mxu0 0.0
        %1447 = vmatpush1.msra.mxu0 0.0
        %1448 = vmatprep.subr.mxu0 0.0
        %1449 = vmatpush1.msra.mxu0 0.0
        %1450 = vmatprep.mubr.f32.mxu0 0.0
        %1451 = vmatmul.mubr.f32.gmra.mrb[0].mxu0 %v1384
        %v1452 = vpop.f32.mrb[0].mxu0
        %v1453 = vadd.f32 0.0, %v1452
        %v1454 = vpop.f32.mrb[0].mxu0
        %1455 = vdwg.mxu0
        %s1456 = sld [smem:[#allocation15 + $0x180]]
        %v1457 = vstv %s1456
        %v1458 = vmul.f32 %v812, %v1457
        %s1459 = sld [smem:[#allocation15 + $0x181]]
        %v1460 = vstv %s1459
        %v1461 = vmul.f32 %v819, %v1460
        %v1462 = vadd.f32 %v1458, %v1461
        %s1463 = sld [smem:[#allocation15 + $0x182]]
        %v1464 = vstv %s1463
        %v1465 = vmul.f32 %v826, %v1464
        %v1466 = vadd.f32 %v1462, %v1465
        %s1467 = sld [smem:[#allocation15 + $0x183]]
        %v1468 = vstv %s1467
        %v1469 = vmul.f32 %v833, %v1468
        %v1470 = vadd.f32 %v1466, %v1469
        %s1471 = sld [smem:[#allocation15 + $0x184]]
        %v1472 = vstv %s1471
        %v1473 = vmul.f32 %v840, %v1472
        %v1474 = vadd.f32 %v1470, %v1473
        %s1475 = sld [smem:[#allocation15 + $0x185]]
        %v1476 = vstv %s1475
        %v1477 = vmul.f32 %v847, %v1476
        %v1478 = vadd.f32 %v1474, %v1477
        %s1479 = sld [smem:[#allocation15 + $0x186]]
        %v1480 = vstv %s1479
        %v1481 = vmul.f32 %v854, %v1480
        %v1482 = vadd.f32 %v1478, %v1481
        %s1483 = sld [smem:[#allocation15 + $0x187]]
        %v1484 = vstv %s1483
        %v1485 = vmul.f32 %v861, %v1484
        %v1486 = vadd.f32 %v1482, %v1485
        %1487 = vrot.lane.b32.xlu0 %v630, 104
        %v1488 = vpop.permute.xlu0 %1487
        %1489 = vrot.lane.b32.xlu0 %v715, 104
        %v1490 = vpop.permute.xlu0 %1489
        %v1491 = vsel %vm893, %v1488, 0
        %v1493 = vsel %vm893, %v1490, 0
        %1495 = vmatprep.subr.mxu0 0.0
        %1496 = vmatpush1.xpose.msra.mxu0 %v1493
        %1497 = vmatprep.subr.mxu0 0.0
        %1498 = vmatpush1.xpose.msra.mxu0 0.0
        %1499 = vmatprep.subr.mxu0 0.0
        %1500 = vmatpush1.xpose.msra.mxu0 0.0
        %1501 = vmatprep.subr.mxu0 0.0
        %1502 = vmatpush1.xpose.msra.mxu0 0.0
        %1503 = vmatprep.subr.mxu0 0.0
        %1504 = vmatpush1.xpose.msra.mxu0 0.0
        %1505 = vmatprep.subr.mxu0 0.0
        %1506 = vmatpush1.xpose.msra.mxu0 0.0
        %1507 = vmatprep.subr.mxu0 0.0
        %1508 = vmatpush1.xpose.msra.mxu0 0.0
        %1509 = vmatprep.subr.mxu0 0.0
        %1510 = vmatpush1.xpose.msra.mxu0 0.0
        %1511 = vmatprep.subr.mxu0 0.0
        %1512 = vmatpush1.xpose.msra.mxu0 0.0
        %1513 = vmatprep.subr.mxu0 0.0
        %1514 = vmatpush1.xpose.msra.mxu0 0.0
        %1515 = vmatprep.subr.mxu0 0.0
        %1516 = vmatpush1.xpose.msra.mxu0 0.0
        %1517 = vmatprep.subr.mxu0 0.0
        %1518 = vmatpush1.xpose.msra.mxu0 0.0
        %1519 = vmatprep.subr.mxu0 0.0
        %1520 = vmatpush1.xpose.msra.mxu0 0.0
        %1521 = vmatprep.subr.mxu0 0.0
        %1522 = vmatpush1.xpose.msra.mxu0 0.0
        %1523 = vmatprep.subr.mxu0 0.0
        %1524 = vmatpush1.xpose.msra.mxu0 0.0
        %1525 = vmatprep.subr.mxu0 0.0
        %1526 = vmatpush1.xpose.msra.mxu0 0.0
        %1527 = vmatprep.subr.mxu0 0.0
        %1528 = vmatpush1.xpose.msra.mxu0 0.0
        %1529 = vmatprep.subr.mxu0 0.0
        %1530 = vmatpush1.xpose.msra.mxu0 0.0
        %1531 = vmatprep.subr.mxu0 0.0
        %1532 = vmatpush1.xpose.msra.mxu0 0.0
        %1533 = vmatprep.subr.mxu0 0.0
        %1534 = vmatpush1.xpose.msra.mxu0 0.0
        %1535 = vmatprep.subr.mxu0 0.0
        %1536 = vmatpush1.xpose.msra.mxu0 0.0
        %1537 = vmatprep.subr.mxu0 0.0
        %1538 = vmatpush1.xpose.msra.mxu0 0.0
        %1539 = vmatprep.subr.mxu0 0.0
        %1540 = vmatpush1.xpose.msra.mxu0 0.0
        %1541 = vmatprep.subr.mxu0 0.0
        %1542 = vmatpush1.xpose.msra.mxu0 0.0
        %1543 = vmatprep.subr.mxu0 0.0
        %1544 = vmatpush1.xpose.msra.mxu0 0.0
        %1545 = vmatprep.subr.mxu0 0.0
        %1546 = vmatpush1.xpose.msra.mxu0 0.0
        %1547 = vmatprep.subr.mxu0 0.0
        %1548 = vmatpush1.xpose.msra.mxu0 0.0
        %1549 = vmatprep.subr.mxu0 0.0
        %1550 = vmatpush1.xpose.msra.mxu0 0.0
        %1551 = vmatprep.subr.mxu0 0.0
        %1552 = vmatpush1.xpose.msra.mxu0 0.0
        %1553 = vmatprep.subr.mxu0 0.0
        %1554 = vmatpush1.xpose.msra.mxu0 0.0
        %1555 = vmatprep.subr.mxu0 0.0
        %1556 = vmatpush1.xpose.msra.mxu0 0.0
        %1557 = vmatprep.subr.mxu0 0.0
        %1558 = vmatpush1.xpose.msra.mxu0 0.0
        %1559 = vmatprep.mubr.f32.mxu0 0.0
        %1560 = vmatmul.mubr.f32.gmra.mrb[0].mxu0 %v1491
        %v1561 = vpop.f32.mrb[0].mxu0
        %v1562 = vadd.f32 %v1486, %v1561
        %v1563 = vpop.f32.mrb[0].mxu0
        %1564 = vdwg.mxu0
        %s1565 = sld [smem:[#allocation16 + $0x3]]
        %v1566 = vstv %s1565
        %v1567 = vadd.f32 %v1562, %v1566
        %v1568 = vsel %vm893, %v1567, -inf
        %1569 = vmax.xlane.f32.xlu0 %v1568
        %v1570 = vpop.xlane.xlu0 %1569
        %v1571 = vsub.f32 %v1567, %v1570
        %v1572 = vmul.f32 %v1571, 1.442695
        %v1573 = vpow.pop %v1572
        %v1574 = vsel %vm893, %v1573, 0.0
        %1575 = vadd.xlane.f32.xlu0 %v1574
        %v1576 = vpop.xlane.xlu0 %1575
        %v1577 = vrcp.pop %v1576
        %v1578 = vmul.f32 %v1573, %v1577
        %1579 = vrot.lane.b32.xlu0 %v802, 104
        %v1580 = vpop.permute.xlu0 %1579
        %v1583 = vsel %vm893, %v1578, 0
        %1585 = vmatprep.subr.mxu0 0.0
        %1586 = vmatpush1.msra.mxu0 %v1580
        %1587 = vmatprep.subr.mxu0 0.0
        %1588 = vmatpush1.msra.mxu0 0.0
        %1589 = vmatprep.subr.mxu0 0.0
        %1590 = vmatpush1.msra.mxu0 0.0
        %1591 = vmatprep.subr.mxu0 0.0
        %1592 = vmatpush1.msra.mxu0 0.0
        %1593 = vmatprep.subr.mxu0 0.0
        %1594 = vmatpush1.msra.mxu0 0.0
        %1595 = vmatprep.subr.mxu0 0.0
        %1596 = vmatpush1.msra.mxu0 0.0
        %1597 = vmatprep.subr.mxu0 0.0
        %1598 = vmatpush1.msra.mxu0 0.0
        %1599 = vmatprep.subr.mxu0 0.0
        %1600 = vmatpush1.msra.mxu0 0.0
        %1601 = vmatprep.subr.mxu0 0.0
        %1602 = vmatpush1.msra.mxu0 0.0
        %1603 = vmatprep.subr.mxu0 0.0
        %1604 = vmatpush1.msra.mxu0 0.0
        %1605 = vmatprep.subr.mxu0 0.0
        %1606 = vmatpush1.msra.mxu0 0.0
        %1607 = vmatprep.subr.mxu0 0.0
        %1608 = vmatpush1.msra.mxu0 0.0
        %1609 = vmatprep.subr.mxu0 0.0
        %1610 = vmatpush1.msra.mxu0 0.0
        %1611 = vmatprep.subr.mxu0 0.0
        %1612 = vmatpush1.msra.mxu0 0.0
        %1613 = vmatprep.subr.mxu0 0.0
        %1614 = vmatpush1.msra.mxu0 0.0
        %1615 = vmatprep.subr.mxu0 0.0
        %1616 = vmatpush1.msra.mxu0 0.0
        %1617 = vmatprep.subr.mxu0 0.0
        %1618 = vmatpush1.msra.mxu0 0.0
        %1619 = vmatprep.subr.mxu0 0.0
        %1620 = vmatpush1.msra.mxu0 0.0
        %1621 = vmatprep.subr.mxu0 0.0
        %1622 = vmatpush1.msra.mxu0 0.0
        %1623 = vmatprep.subr.mxu0 0.0
        %1624 = vmatpush1.msra.mxu0 0.0
        %1625 = vmatprep.subr.mxu0 0.0
        %1626 = vmatpush1.msra.mxu0 0.0
        %1627 = vmatprep.subr.mxu0 0.0
        %1628 = vmatpush1.msra.mxu0 0.0
        %1629 = vmatprep.subr.mxu0 0.0
        %1630 = vmatpush1.msra.mxu0 0.0
        %1631 = vmatprep.subr.mxu0 0.0
        %1632 = vmatpush1.msra.mxu0 0.0
        %1633 = vmatprep.subr.mxu0 0.0
        %1634 = vmatpush1.msra.mxu0 0.0
        %1635 = vmatprep.subr.mxu0 0.0
        %1636 = vmatpush1.msra.mxu0 0.0
        %1637 = vmatprep.subr.mxu0 0.0
        %1638 = vmatpush1.msra.mxu0 0.0
        %1639 = vmatprep.subr.mxu0 0.0
        %1640 = vmatpush1.msra.mxu0 0.0
        %1641 = vmatprep.subr.mxu0 0.0
        %1642 = vmatpush1.msra.mxu0 0.0
        %1643 = vmatprep.subr.mxu0 0.0
        %1644 = vmatpush1.msra.mxu0 0.0
        %1645 = vmatprep.subr.mxu0 0.0
        %1646 = vmatpush1.msra.mxu0 0.0
        %1647 = vmatprep.subr.mxu0 0.0
        %1648 = vmatpush1.msra.mxu0 0.0
        %1649 = vmatprep.mubr.f32.mxu0 0.0
        %1650 = vmatmul.mubr.f32.gmra.mrb[0].mxu0 %v1583
        %v1651 = vpop.f32.mrb[0].mxu0
        %v1652 = vadd.f32 0.0, %v1651
        %v1653 = vpop.f32.mrb[0].mxu0
        %1654 = vdwg.mxu0
        %1656 = vrot.lane.b32.xlu0 %v1254, 8
        %v1657 = vpop.permute.xlu0 %1656
        %1660 = vrot.lane.b32.xlu0 %v1453, 16
        %v1661 = vpop.permute.xlu0 %1660
        %1664 = vrot.lane.b32.xlu0 %v1652, 24
        %v1665 = vpop.permute.xlu0 %1664
        %v1667 = vsel %vm893, %v1054, %v1657
        %vm1668 = vcmask 130048
        %v1669 = vsel %vm1668, %v1667, %v1661
        %vm1670 = vcmask 195584
        %v1671 = vsel %vm1670, %v1669, %v1665
        %s1672 = scalar_lea.vmem [#allocation9], 96
        %v1673 = vld [vmem:[%s1672] sm:$0xff]
        %v1674 = vld [vmem:[%s1672 + $0x8] sm:$0xff]
        %v1675 = vld [vmem:[%s1672 + $0x10] sm:$0xff]
        %v1676 = vld [vmem:[%s1672 + $0x18] sm:$0xff]
        %s1677 = scalar_lea.vmem [#allocation11], 3
        %v1678 = vld [vmem:[%s1677] sm:$0x1]
        %v1680 = vlaneseq
        %v1681 = vshrl.u32 %v1680, 7
        %v1682 = vsub.s32 0, %v1681
        %v1683 = vrot.slane %v1678, %v1682
        %v1686 = vsel %vm556, %v1671, 0
        %1688 = vmatprep.subr.mxu0 0.0
        %1689 = vmatpush1.msra.mxu0 %v1673
        %1690 = vmatprep.subr.mxu0 0.0
        %1691 = vmatpush1.msra.mxu0 %v1674
        %1692 = vmatprep.subr.mxu0 0.0
        %1693 = vmatpush1.msra.mxu0 %v1675
        %1694 = vmatprep.subr.mxu0 0.0
        %1695 = vmatpush1.msra.mxu0 %v1676
        %1696 = vmatprep.subr.mxu0 0.0
        %1697 = vmatpush1.msra.mxu0 0.0
        %1698 = vmatprep.subr.mxu0 0.0
        %1699 = vmatpush1.msra.mxu0 0.0
        %1700 = vmatprep.subr.mxu0 0.0
        %1701 = vmatpush1.msra.mxu0 0.0
        %1702 = vmatprep.subr.mxu0 0.0
        %1703 = vmatpush1.msra.mxu0 0.0
        %1704 = vmatprep.subr.mxu0 0.0
        %1705 = vmatpush1.msra.mxu0 0.0
        %1706 = vmatprep.subr.mxu0 0.0
        %1707 = vmatpush1.msra.mxu0 0.0
        %1708 = vmatprep.subr.mxu0 0.0
        %1709 = vmatpush1.msra.mxu0 0.0
        %1710 = vmatprep.subr.mxu0 0.0
        %1711 = vmatpush1.msra.mxu0 0.0
        %1712 = vmatprep.subr.mxu0 0.0
        %1713 = vmatpush1.msra.mxu0 0.0
        %1714 = vmatprep.subr.mxu0 0.0
        %1715 = vmatpush1.msra.mxu0 0.0
        %1716 = vmatprep.subr.mxu0 0.0
        %1717 = vmatpush1.msra.mxu0 0.0
        %1718 = vmatprep.subr.mxu0 0.0
        %1719 = vmatpush1.msra.mxu0 0.0
        %1720 = vmatprep.subr.mxu0 0.0
        %1721 = vmatpush1.msra.mxu0 0.0
        %1722 = vmatprep.subr.mxu0 0.0
        %1723 = vmatpush1.msra.mxu0 0.0
        %1724 = vmatprep.subr.mxu0 0.0
        %1725 = vmatpush1.msra.mxu0 0.0
        %1726 = vmatprep.subr.mxu0 0.0
        %1727 = vmatpush1.msra.mxu0 0.0
        %1728 = vmatprep.subr.mxu0 0.0
        %1729 = vmatpush1.msra.mxu0 0.0
        %1730 = vmatprep.subr.mxu0 0.0
        %1731 = vmatpush1.msra.mxu0 0.0
        %1732 = vmatprep.subr.mxu0 0.0
        %1733 = vmatpush1.msra.mxu0 0.0
        %1734 = vmatprep.subr.mxu0 0.0
        %1735 = vmatpush1.msra.mxu0 0.0
        %1736 = vmatprep.subr.mxu0 0.0
        %1737 = vmatpush1.msra.mxu0 0.0
        %1738 = vmatprep.subr.mxu0 0.0
        %1739 = vmatpush1.msra.mxu0 0.0
        %1740 = vmatprep.subr.mxu0 0.0
        %1741 = vmatpush1.msra.mxu0 0.0
        %1742 = vmatprep.subr.mxu0 0.0
        %1743 = vmatpush1.msra.mxu0 0.0
        %1744 = vmatprep.subr.mxu0 0.0
        %1745 = vmatpush1.msra.mxu0 0.0
        %1746 = vmatprep.subr.mxu0 0.0
        %1747 = vmatpush1.msra.mxu0 0.0
        %1748 = vmatprep.subr.mxu0 0.0
        %1749 = vmatpush1.msra.mxu0 0.0
        %1750 = vmatprep.subr.mxu0 0.0
        %1751 = vmatpush1.msra.mxu0 0.0
        %1752 = vmatprep.mubr.f32.mxu0 0.0
        %1753 = vmatmul.mubr.f32.gmra.mrb[0].mxu0 %v1686
        %v1754 = vpop.f32.mrb[0].mxu0
        %v1755 = vadd.f32 %v1683, %v1754
        %v1756 = vpop.f32.mrb[0].mxu0
        %1757 = vdwg.mxu0
        %1758 = vst.msk [vmem:[%s539] sm:$0xff] %vm556, %v1755
        %s1759 = sand.u32 %s272, 1
        %s1760 = scalar_lea.sflag [#allocation4], %s1759
        %s1761 = sand.u32 %s272, 1
        %s1762 = smul.addr %s1761, 8
        %s1763 = scalar_lea.vmem [#allocation18], %s1762
        // Predicated region
        $region97: #{tpu_custom_call.1} parent=59 // pred_check
          %p1764 = pneg %p282
        $region98: #{tpu_custom_call.1} parent=59 // pred_check_branch
          %1766 = sbr.rel (%p1764) target = $region100
        $region99: #{tpu_custom_call.1} parent=59 // pred_region
          %s1768 = ssub.s32 128, 128
          %1769 = vsyncadd %s1760, %s1768
          %s1770 = smul.addr %s34, 128
          %s1771 = scalar_lea.hbm %s10, %s1770
          %s1773 = sshll.u32 %s1763, 4
          %s1774 = int_to_ptr.vmem [resolvable:$true] %s1773
          %1776 = dma.vmem_to_hbm [thread:$0]  %s1774, 128, %s1771, %s1760
        $region100: #{tpu_custom_call.1} parent=59 // pred_fallthru
          _
      $region60: #{tpu_custom_call.1} parent=5 // pred_fallthru
        _
      %p1777 = scmp.le.s32.totalorder 2, %s29
      // Predicated region
      $region101: #{tpu_custom_call.1} parent=5 // pred_check
        %p1778 = pneg %p1777
      $region102: #{tpu_custom_call.1} parent=5 // pred_check_branch
        %1780 = sbr.rel (%p1778) target = $region104
      $region103: #{tpu_custom_call.1} parent=5 // pred_region
        %s1781 = ssub.s32 %s29, 2
        // Predicated region
        $region105: #{tpu_custom_call.1} parent=103 // pred_check
          %p1782 = pneg %p288
        $region106: #{tpu_custom_call.1} parent=103 // pred_check_branch
          %1784 = sbr.rel (%p1782) target = $region108
        $region107: #{tpu_custom_call.1} parent=103 // pred_region
          %s1785 = sand.u32 %s273, 1
          %s1786 = scalar_lea.sflag [#allocation4], %s1785
          %s1787 = sand.u32 %s273, 1
          %s1788 = smul.addr %s1787, 8
          %s1789 = scalar_lea.vmem [#allocation18], %s1788
          %1790 = dma.done %s1786, 128
        $region108: #{tpu_custom_call.1} parent=103 // pred_fallthru
          _
      $region104: #{tpu_custom_call.1} parent=5 // pred_fallthru
        _
    $region6: #{tpu_custom_call.1} parent=1 // loop_footer
      %s33 = sadd.s32 1, %s29
    $region7: #{tpu_custom_call.1} parent=1 // loop_footer_branch
      %28 = sbr.rel target = $region3
    $region8: #{tpu_custom_call.1} parent=1 // loop_exit
      _
    %1791 = vsyncpa [#allocation3], 1
    %s1792 = scalar_lea.sflag [#allocation3], 1
    %1793 = vsyncpa %s1792, 1
    %1794 = vsyncpa [#allocation7], 1
    %s1795 = scalar_lea.sflag [#allocation7], 1
    %1796 = vsyncpa %s1795, 1
    %1797 = vsyncpa [#allocation10], 1
    %1798 = vsyncpa [#allocation4], 1
    %s1799 = scalar_lea.sflag [#allocation4], 1
    %1800 = vsyncpa %s1799, 1
    %1801 = vsyncpa [#allocation5], 1
    %s1802 = scalar_lea.sflag [#allocation5], 1
    %1803 = vsyncpa %s1802, 1
    %1804 = vsyncpa [#allocation14], 1
    %1805 = vsyncpa [#allocation17], 1

</llo_original>
